<compile_context>
chip_gen: v7x
topology: tpu7x:2x2x1
jax: 0.10.0
libtpu: 0.0.40
codegen_flags: <defaults>
</compile_context>

<pallas_src>
import jax
import jax.numpy as jnp
from jax.experimental import pallas as pl
from jax.experimental.pallas import tpu as pltpu

_BN_EPS = 1e-5


# ------------------------------ Pallas kernel -------------------------------

def _transition_kernel(x_ref, scale2_ref, bias2_ref, w_ref, o_ref):
    """Fused BN -> ReLU -> avgpool2x2 -> 1x1 conv for one (image, row-tile) block.

    x_ref      : (TH, 2, Wo, 2*Cin)   pool rows explicit, pool cols packed in lanes
    scale2/bias2: (1, 2*Cin)          per-channel BN affine, duplicated for the packed lanes
    w_ref      : (Cin, Cout)
    o_ref      : (TH, Wo, Cout)
    """
    scale2 = scale2_ref[...]
    bias2 = bias2_ref[...]
    # Pre-activation BN + ReLU, applied per pooling row to keep live values small.
    y0 = jnp.maximum(x_ref[:, 0, :, :] * scale2 + bias2, 0.0)   # (TH, Wo, 2*Cin)
    y1 = jnp.maximum(x_ref[:, 1, :, :] * scale2 + bias2, 0.0)
    s = y0 + y1                                                  # sum over pool rows
    cin = s.shape[-1] // 2
    # Sum the two pooled columns (packed as lane halves) and average the 2x2 window.
    p = (s[..., :cin] + s[..., cin:]) * 0.25                     # (TH, Wo, Cin)
    th, wo, _ = p.shape
    # 1x1 conv == matmul over channels (pool-then-conv == conv-then-pool, conv is linear).
    acc = jnp.dot(p.reshape(th * wo, cin), w_ref[...],
                  preferred_element_type=jnp.float32)
    o_ref[...] = acc.reshape(th, wo, -1).astype(o_ref.dtype)


# ------------------------------ kernel wrapper -------------------------------

def _pick_row_tile(ho, wo, cin, cout):
    """Largest divisor of Ho whose block fits a conservative VMEM budget and
    gives roughly 512-1024 matmul rows per grid step."""
    budget = 8 * 1024 * 1024          # per-step budget, x2 double-buffer headroom inside
    target_rows = 1024
    best = 1
    for th in range(1, ho + 1):
        if ho % th:
            continue
        blk_bytes = 2 * (th * 2 * wo * 2 * cin * 4 + th * wo * cout * 4)
        if blk_bytes <= budget and th * wo <= max(target_rows, wo):
            best = th
    return best


def transition_layer_forward(x_nchw, params):
    """TransitionLayer forward: NCHW in -> NCHW out (matches the PyTorch module)."""
    scale, bias = params["bn_scale"], params["bn_bias"]
    w = params["conv_w"]                          # (Cin, Cout)
    cin, cout = w.shape

    n, c, h, wd = x_nchw.shape
    assert c == cin
    ho, wo = h // 2, wd // 2
    # AvgPool2d(2,2) floors: an odd trailing row/col never reaches the output.
    x = x_nchw[:, :, : 2 * ho, : 2 * wo]
    # NCHW -> NHWC (channels on lanes), then a zero-copy reshape exposing the
    # 2x2 pooling structure: (N, Ho, 2, Wo, 2*Cin).
    x = jnp.transpose(x, (0, 2, 3, 1)).astype(jnp.float32)
    x = x.reshape(n, ho, 2, wo, 2 * cin)

    # BN affine duplicated to match the packed (pool-col, channel) lane dimension.
    scale2 = jnp.concatenate([scale, scale]).reshape(1, 2 * cin).astype(jnp.float32)
    bias2 = jnp.concatenate([bias, bias]).reshape(1, 2 * cin).astype(jnp.float32)

    th = _pick_row_tile(ho, wo, cin, cout)
    grid = (n, ho // th)

    out = pl.pallas_call(
        _transition_kernel,
        out_shape=jax.ShapeDtypeStruct((n, ho, wo, cout), jnp.float32),
        grid=grid,
        in_specs=[
            pl.BlockSpec((None, th, 2, wo, 2 * cin), lambda b, i: (b, i, 0, 0, 0)),
            pl.BlockSpec((1, 2 * cin), lambda b, i: (0, 0)),
            pl.BlockSpec((1, 2 * cin), lambda b, i: (0, 0)),
            pl.BlockSpec((cin, cout), lambda b, i: (0, 0)),
        ],
        out_specs=pl.BlockSpec((None, th, wo, cout), lambda b, i: (b, i, 0, 0)),
        compiler_params=pltpu.CompilerParams(
            dimension_semantics=("parallel", "parallel"),
            vmem_limit_bytes=32 * 1024 * 1024,
        ),
    )(x, scale2, bias2, w)

    return jnp.transpose(out, (0, 3, 1, 2))       # NHWC -> NCHW


# ------------------------------- reference ----------------------------------

def transition_reference(x_nchw, params):
    """Pure-JAX reference with PyTorch op ordering: bn -> relu -> conv1x1 -> avgpool."""
    scale, bias = params["bn_scale"], params["bn_bias"]
    w = params["conv_w"]
    x = x_nchw.astype(jnp.float32)
    y = jnp.maximum(x * scale[None, :, None, None] + bias[None, :, None, None], 0.0)
    z = jnp.einsum("nchw,cd->ndhw", y, w)
    n, d, h, wd = z.shape
    ho, wo = h // 2, wd // 2
    z = z[:, :, : 2 * ho, : 2 * wo]
    return z.reshape(n, d, ho, 2, wo, 2).mean(axis=(3, 5))


# ------------------------- parameter initialization -------------------------

def init_params(key, in_channels, out_channels):
    k1, k2, k3, k4, k5 = jax.random.split(key, 5)
    gamma = jax.random.uniform(k1, (in_channels,), minval=0.5, maxval=1.5)
    beta = jax.random.uniform(k2, (in_channels,), minval=-0.1, maxval=0.1)
    mean = jax.random.uniform(k3, (in_channels,), minval=-0.1, maxval=0.1)
    var = jax.random.uniform(k4, (in_channels,), minval=0.5, maxval=1.5)
    scale = gamma / jnp.sqrt(var + _BN_EPS)       # inference-mode BN folded to affine
    bias = beta - mean * scale
    conv_w = 0.05 * jax.random.normal(k5, (in_channels, out_channels), jnp.float32)
    return {"bn_scale": scale.astype(jnp.float32),
            "bn_bias": bias.astype(jnp.float32),
            "conv_w": conv_w}


# ----------------------------------- main ------------------------------------

if __name__ == "__main__":
    key = jax.random.PRNGKey(0)
    kp, kx = jax.random.split(key)

    in_channels, out_channels = 256, 128          # DenseNet transition halves channels
    batch, height, width = 2, 32, 32

    params = init_params(kp, in_channels, out_channels)
    x = jax.random.normal(kx, (batch, in_channels, height, width), dtype=jnp.float32)

    fwd = jax.jit(lambda xx: transition_layer_forward(xx, params))
    out = fwd(x)
    jax.block_until_ready(out)

    ref = transition_reference(x, params)
    assert out.shape == (batch, out_channels, height // 2, width // 2)
    assert bool(jnp.all(jnp.isfinite(out)))
    max_err = float(jnp.max(jnp.abs(out - ref)))
    assert max_err < 1e-3, f"max abs error vs reference: {max_err}"
    print("KERNEL_OK")
</pallas_src>

<mosaic_0001>
module attributes {stable_mosaic.version = 11 : i64} {
  func.func @_transition_kernel(%arg0: i32, %arg1: i32, %arg2: memref<1x16x2x16x512xf32, #tpu.memory_space<vmem>>, %arg3: memref<1x512xf32, #tpu.memory_space<vmem>>, %arg4: memref<1x512xf32, #tpu.memory_space<vmem>>, %arg5: memref<256x128xf32, #tpu.memory_space<vmem>>, %arg6: memref<1x16x16x128xf32, #tpu.memory_space<vmem>>) attributes {dimension_semantics = [#tpu.dimension_semantics<parallel>, #tpu.dimension_semantics<parallel>], iteration_bounds = array<i64: 2, 1>, scalar_prefetch = 0 : i64, scratch_operands = 0 : i64, tpu.core_type = #tpu.core_type<tc>, window_params = [{transform_indices = @transform_0, window_bounds = array<i64: 1, 16, 2, 16, 512>}, {pipeline_mode = #tpu.pipeline_mode<synchronous>, transform_indices = @transform_1, window_bounds = array<i64: 1, 512>}, {pipeline_mode = #tpu.pipeline_mode<synchronous>, transform_indices = @transform_2, window_bounds = array<i64: 1, 512>}, {pipeline_mode = #tpu.pipeline_mode<synchronous>, transform_indices = @transform_3, window_bounds = array<i64: 256, 128>}, {transform_indices = @transform_4, window_bounds = array<i64: 1, 16, 16, 128>}]} {
    %c0 = arith.constant 0 : index
    %c0_0 = arith.constant 0 : index
    %0 = vector.load %arg3[%c0, %c0_0] : memref<1x512xf32, #tpu.memory_space<vmem>>, vector<1x512xf32>
    %c0_1 = arith.constant 0 : index
    %c0_2 = arith.constant 0 : index
    %1 = vector.load %arg4[%c0_1, %c0_2] : memref<1x512xf32, #tpu.memory_space<vmem>>, vector<1x512xf32>
    %c0_3 = arith.constant 0 : index
    %c0_4 = arith.constant 0 : index
    %c0_5 = arith.constant 0 : index
    %c0_6 = arith.constant 0 : index
    %c0_7 = arith.constant 0 : index
    %2 = vector.load %arg2[%c0_3, %c0_4, %c0_5, %c0_6, %c0_7] : memref<1x16x2x16x512xf32, #tpu.memory_space<vmem>>, vector<1x16x1x16x512xf32>
    %3 = vector.shape_cast %2 : vector<1x16x1x16x512xf32> to vector<16x16x512xf32>
    %4 = vector.shape_cast %0 : vector<1x512xf32> to vector<1x1x512xf32>
    %5 = vector.broadcast %4 : vector<1x1x512xf32> to vector<16x16x512xf32>
    %6 = arith.mulf %3, %5 : vector<16x16x512xf32>
    %7 = vector.shape_cast %1 : vector<1x512xf32> to vector<1x1x512xf32>
    %8 = vector.broadcast %7 : vector<1x1x512xf32> to vector<16x16x512xf32>
    %9 = arith.addf %6, %8 : vector<16x16x512xf32>
    %cst = arith.constant 0.000000e+00 : f32
    %10 = vector.broadcast %cst : f32 to vector<16x16x512xf32>
    %11 = arith.maximumf %9, %10 : vector<16x16x512xf32>
    %c0_8 = arith.constant 0 : index
    %c0_9 = arith.constant 0 : index
    %c1 = arith.constant 1 : index
    %c0_10 = arith.constant 0 : index
    %c0_11 = arith.constant 0 : index
    %12 = vector.load %arg2[%c0_8, %c0_9, %c1, %c0_10, %c0_11] : memref<1x16x2x16x512xf32, #tpu.memory_space<vmem>>, vector<1x16x1x16x512xf32>
    %13 = vector.shape_cast %12 : vector<1x16x1x16x512xf32> to vector<16x16x512xf32>
    %14 = vector.shape_cast %0 : vector<1x512xf32> to vector<1x1x512xf32>
    %15 = vector.broadcast %14 : vector<1x1x512xf32> to vector<16x16x512xf32>
    %16 = arith.mulf %13, %15 : vector<16x16x512xf32>
    %17 = vector.shape_cast %1 : vector<1x512xf32> to vector<1x1x512xf32>
    %18 = vector.broadcast %17 : vector<1x1x512xf32> to vector<16x16x512xf32>
    %19 = arith.addf %16, %18 : vector<16x16x512xf32>
    %cst_12 = arith.constant 0.000000e+00 : f32
    %20 = vector.broadcast %cst_12 : f32 to vector<16x16x512xf32>
    %21 = arith.maximumf %19, %20 : vector<16x16x512xf32>
    %22 = arith.addf %11, %21 : vector<16x16x512xf32>
    %23 = vector.extract_strided_slice %22 {offsets = [0, 0, 0], sizes = [16, 16, 256], strides = [1, 1, 1]} : vector<16x16x512xf32> to vector<16x16x256xf32>
    %24 = vector.extract_strided_slice %22 {offsets = [0, 0, 256], sizes = [16, 16, 256], strides = [1, 1, 1]} : vector<16x16x512xf32> to vector<16x16x256xf32>
    %25 = arith.addf %23, %24 : vector<16x16x256xf32>
    %cst_13 = arith.constant 2.500000e-01 : f32
    %26 = vector.broadcast %cst_13 : f32 to vector<16x16x256xf32>
    %27 = arith.mulf %25, %26 : vector<16x16x256xf32>
    %28 = vector.shape_cast %27 : vector<16x16x256xf32> to vector<256x256xf32>
    %c0_14 = arith.constant 0 : index
    %c0_15 = arith.constant 0 : index
    %29 = vector.load %arg5[%c0_14, %c0_15] : memref<256x128xf32, #tpu.memory_space<vmem>>, vector<256x128xf32>
    %cst_16 = arith.constant dense<0.000000e+00> : vector<256x128xf32>
    %30 = tpu.matmul %28, %29, %cst_16 {dimension_numbers = #tpu.dot_dimension_numbers<[1], [0], [0], [1], [0, 0, 1, 1], [], []>} : vector<256x256xf32>, vector<256x128xf32>, vector<256x128xf32> -> vector<256x128xf32>
    %31 = vector.shape_cast %30 : vector<256x128xf32> to vector<16x16x128xf32>
    %c0_17 = arith.constant 0 : index
    %c0_18 = arith.constant 0 : index
    %c0_19 = arith.constant 0 : index
    %c0_20 = arith.constant 0 : index
    %32 = vector.load %arg6[%c0_17, %c0_18, %c0_19, %c0_20] : memref<1x16x16x128xf32, #tpu.memory_space<vmem>>, vector<1x16x16x128xf32>
    %33 = vector.shape_cast %32 : vector<1x16x16x128xf32> to vector<16x16x128xf32>
    %34 = vector.shape_cast %31 : vector<16x16x128xf32> to vector<1x16x16x128xf32>
    tpu.vector_store %arg6[%c0_17, %c0_18, %c0_19, %c0_20], %34 {strides = array<i32>} : memref<1x16x16x128xf32, #tpu.memory_space<vmem>>, vector<1x16x16x128xf32>,
    return
  }
  func.func @transform_0(%arg0: i32, %arg1: i32) -> (i32, i32, i32, i32, i32) {
    %c0_i32 = arith.constant 0 : i32
    %c0_i32_0 = arith.constant 0 : i32
    %c0_i32_1 = arith.constant 0 : i32
    %c0_i32_2 = arith.constant 0 : i32
    return %arg0, %arg1, %c0_i32, %c0_i32_0, %c0_i32_1 : i32, i32, i32, i32, i32
  }
  func.func @transform_1(%arg0: i32, %arg1: i32) -> (i32, i32) {
    %c0_i32 = arith.constant 0 : i32
    %c0_i32_0 = arith.constant 0 : i32
    %c0_i32_1 = arith.constant 0 : i32
    return %c0_i32, %c0_i32_0 : i32, i32
  }
  func.func @transform_2(%arg0: i32, %arg1: i32) -> (i32, i32) {
    %c0_i32 = arith.constant 0 : i32
    %c0_i32_0 = arith.constant 0 : i32
    %c0_i32_1 = arith.constant 0 : i32
    return %c0_i32, %c0_i32_0 : i32, i32
  }
  func.func @transform_3(%arg0: i32, %arg1: i32) -> (i32, i32) {
    %c0_i32 = arith.constant 0 : i32
    %c0_i32_0 = arith.constant 0 : i32
    %c0_i32_1 = arith.constant 0 : i32
    return %c0_i32, %c0_i32_0 : i32, i32
  }
  func.func @transform_4(%arg0: i32, %arg1: i32) -> (i32, i32, i32, i32) {
    %c0_i32 = arith.constant 0 : i32
    %c0_i32_0 = arith.constant 0 : i32
    %c0_i32_1 = arith.constant 0 : i32
    return %arg0, %arg1, %c0_i32, %c0_i32_0 : i32, i32, i32, i32
  }
}

</mosaic_0001>

<llo_original>
// kernel: _lambda_.1
$region0: #{_lambda_.1}
  #allocation0 [shape = 'u32[]', space=smem, size = 0x4, offset = 0x4, fixed_abs, tag = 'smem constant byte address 0x4 - core index']
  #allocation1 [shape = 'u32[144,128]{1,0:T(1,128)}', space=vmem, size = 0x12000, scoped, tag = 'internal scratch']
  %s0 = inlined_call_operand.vmem [shape: f32[2,16,2,16,512], index: 0, kind: input, shape index: {}]
  %s1 = inlined_call_operand.vmem [shape: f32[1,512], index: 1, kind: input, shape index: {}]
  %s2 = inlined_call_operand.vmem [shape: f32[1,512], index: 2, kind: input, shape index: {}]
  %s3 = inlined_call_operand.vmem [shape: f32[256,128], index: 3, kind: input, shape index: {}]
  %s4 = inlined_call_operand.hbm [shape: f32[2,16,16,128], index: 4, kind: output, shape index: {}]
  %s5 = sld [smem:[#allocation0]]
  $region49: #{_lambda_.1} parent=0
    _
  %s7 = ssub.s32 1, %s5
  %s8 = scalar_select 0, %s7, %s5
  $region1: #{_lambda_.1} parent=0
    #allocation2 [shape = 'u8[262144]{0}', space=vmem, size = 0x40000, scoped, tag = 'output window, operand 0']
    #allocation3 [shape = 's32[2]{0}', space=sflag, size = 0x8, scoped, tag = 'scoped memory for _lambda_.1']
    %9 = vsyncpa [#allocation3], 0
    %s10 = scalar_lea.sflag [#allocation3], 1
    %11 = vsyncpa %s10, 0
    loop: start=0, step=1, limit=4
    $region2: #{_lambda_.1} parent=1 // loop_pre_header
      _
    $region3: #{_lambda_.1} parent=1 // loop_header
      %s13 = sphi 0, %s17
      %p14 = scmp.ge.s32.totalorder %s13, 4
      %s20 = sphi 0, %s32
      %s21 = sphi 0, %s28
      %s22 = sphi 0, %s20
      %s23 = sphi 0, %s21
      %s24 = sphi 0, %s22
      %s25 = sphi 0, %s23
      %s37 = sphi 0, %s39
      %s40 = sphi 0, %s37
      %s41 = sphi 0, %s40
      %s57 = sphi 0, %s41
      %s61 = sphi 0, %s61
      %s63 = sphi 0, %s61
      %s64 = sphi 0, %s63
      %s78 = sphi 0, %s64
      %s82 = sphi 0, %s82
      %s84 = sphi 0, %s82
      %s85 = sphi 0, %s84
      %s99 = sphi 0, %s85
      %s103 = sphi 0, %s103
      %s105 = sphi 0, %s103
      %s106 = sphi 0, %s105
      %s120 = sphi 0, %s106
      %s128 = sphi 0, %s130
      %s131 = sphi 0, %s128
      %s132 = sphi 0, %s131
      %s148 = sphi 0, %s132
    $region4: #{_lambda_.1} parent=1 // loop_header_branch
      %16 = sbr.rel (%p14) target = $region8
    $region5: #{_lambda_.1} parent=1 // loop_body
      %s18 = ssub.s32 %s13, 1
      %s19 = ssub.s32 %s13, 2
      %s26 = sadd.s32 1, %s21
      %p27 = scmp.ge.s32.totalorder %s26, 1
      %s28 = scalar_select %p27, 0, %s26
      %s29 = sadd.s32 1, %s20
      %s30 = scalar_select %p27, %s29, %s20
      %p31 = scmp.ge.s32.totalorder %s30, 2
      %s32 = scalar_select %p31, 0, %s30
      %s33 = ssub.s32 %s20, %s32
      %s34 = ssub.s32 %s21, %s28
      %s35 = sor.u32 %s33, %s34
      %p36 = scmp.eq.s32.totalorder %s35, 0
      %s38 = sadd.s32 %s37, 1
      %s39 = scalar_select %p36, %s37, %s38
      %p42 = pneg %p36
      %p43 = scmp.eq.s32.totalorder %s13, 1
      %p44 = por %p42, %p43
      %p45 = scmp.ne.s32.totalorder %s37, %s40
      %p46 = scmp.eq.s32.totalorder %s13, 0
      %p47 = por %p45, %p46
      %p48 = scmp.ne.s32.totalorder %s37, %s40
      %p49 = scmp.eq.s32.totalorder %s18, 1
      %p50 = por %p48, %p49
      %p51 = scmp.ne.s32.totalorder %s40, %s41
      %p52 = scmp.eq.s32.totalorder %s18, 0
      %p53 = por %p51, %p52
      %p54 = scmp.ne.s32.totalorder %s40, %s41
      %p55 = scmp.eq.s32.totalorder %s19, 1
      %p56 = por %p54, %p55
      %p58 = scmp.ne.s32.totalorder %s41, %s57
      %p59 = scmp.eq.s32.totalorder %s19, 0
      %p60 = por %p58, %p59
      %s62 = sadd.s32 %s61, 1
      %p65 = scmp.eq.s32.totalorder %s13, 1
      %p66 = scmp.ne.s32.totalorder %s61, %s63
      %p67 = scmp.eq.s32.totalorder %s13, 0
      %p68 = por %p66, %p67
      %p69 = scmp.ne.s32.totalorder %s61, %s63
      %p70 = scmp.eq.s32.totalorder %s18, 1
      %p71 = por %p69, %p70
      %p72 = scmp.ne.s32.totalorder %s63, %s64
      %p73 = scmp.eq.s32.totalorder %s18, 0
      %p74 = por %p72, %p73
      %p75 = scmp.ne.s32.totalorder %s63, %s64
      %p76 = scmp.eq.s32.totalorder %s19, 1
      %p77 = por %p75, %p76
      %p79 = scmp.ne.s32.totalorder %s64, %s78
      %p80 = scmp.eq.s32.totalorder %s19, 0
      %p81 = por %p79, %p80
      %s83 = sadd.s32 %s82, 1
      %p86 = scmp.eq.s32.totalorder %s13, 1
      %p87 = scmp.ne.s32.totalorder %s82, %s84
      %p88 = scmp.eq.s32.totalorder %s13, 0
      %p89 = por %p87, %p88
      %p90 = scmp.ne.s32.totalorder %s82, %s84
      %p91 = scmp.eq.s32.totalorder %s18, 1
      %p92 = por %p90, %p91
      %p93 = scmp.ne.s32.totalorder %s84, %s85
      %p94 = scmp.eq.s32.totalorder %s18, 0
      %p95 = por %p93, %p94
      %p96 = scmp.ne.s32.totalorder %s84, %s85
      %p97 = scmp.eq.s32.totalorder %s19, 1
      %p98 = por %p96, %p97
      %p100 = scmp.ne.s32.totalorder %s85, %s99
      %p101 = scmp.eq.s32.totalorder %s19, 0
      %p102 = por %p100, %p101
      %s104 = sadd.s32 %s103, 1
      %p107 = scmp.eq.s32.totalorder %s13, 1
      %p108 = scmp.ne.s32.totalorder %s103, %s105
      %p109 = scmp.eq.s32.totalorder %s13, 0
      %p110 = por %p108, %p109
      %p111 = scmp.ne.s32.totalorder %s103, %s105
      %p112 = scmp.eq.s32.totalorder %s18, 1
      %p113 = por %p111, %p112
      %p114 = scmp.ne.s32.totalorder %s105, %s106
      %p115 = scmp.eq.s32.totalorder %s18, 0
      %p116 = por %p114, %p115
      %p117 = scmp.ne.s32.totalorder %s105, %s106
      %p118 = scmp.eq.s32.totalorder %s19, 1
      %p119 = por %p117, %p118
      %p121 = scmp.ne.s32.totalorder %s106, %s120
      %p122 = scmp.eq.s32.totalorder %s19, 0
      %p123 = por %p121, %p122
      %s124 = ssub.s32 %s20, %s32
      %s125 = ssub.s32 %s21, %s28
      %s126 = sor.u32 %s124, %s125
      %p127 = scmp.eq.s32.totalorder %s126, 0
      %s129 = sadd.s32 %s128, 1
      %s130 = scalar_select %p127, %s128, %s129
      %p133 = pneg %p127
      %p134 = scmp.eq.s32.totalorder %s13, 1
      %p135 = por %p133, %p134
      %p136 = scmp.ne.s32.totalorder %s128, %s131
      %p137 = scmp.eq.s32.totalorder %s13, 0
      %p138 = por %p136, %p137
      %p139 = scmp.ne.s32.totalorder %s128, %s131
      %p140 = scmp.eq.s32.totalorder %s18, 1
      %p141 = por %p139, %p140
      %p142 = scmp.ne.s32.totalorder %s131, %s132
      %p143 = scmp.eq.s32.totalorder %s18, 0
      %p144 = por %p142, %p143
      %p145 = scmp.ne.s32.totalorder %s131, %s132
      %p146 = scmp.eq.s32.totalorder %s19, 1
      %p147 = por %p145, %p146
      %p149 = scmp.ne.s32.totalorder %s132, %s148
      %p150 = scmp.eq.s32.totalorder %s19, 0
      %p151 = por %p149, %p150
      %p152 = scmp.le.s32.totalorder 1, %s13
      %p153 = scmp.lt.s32.totalorder %s13, 3
      %p154 = pnand %p152, %p153
      %p155 = pneg %p154
      // Predicated region
      $region9: #{_lambda_.1} parent=5 // pred_check
        _
      $region10: #{_lambda_.1} parent=5 // pred_check_branch
        %157 = sbr.rel (%p154) target = $region12
      $region11: #{_lambda_.1} parent=5 // pred_region
        %s158 = ssub.s32 %s13, 1
        // Predicated region
        $region13: #{_lambda_.1} parent=11 // pred_check
          %p159 = pneg %p74
        $region14: #{_lambda_.1} parent=11 // pred_check_branch
          %161 = sbr.rel (%p159) target = $region16
        $region15: #{_lambda_.1} parent=11 // pred_region
          _
        $region16: #{_lambda_.1} parent=11 // pred_fallthru
          _
        // Predicated region
        $region17: #{_lambda_.1} parent=11 // pred_check
          %p162 = pneg %p95
        $region18: #{_lambda_.1} parent=11 // pred_check_branch
          %164 = sbr.rel (%p162) target = $region20
        $region19: #{_lambda_.1} parent=11 // pred_region
          _
        $region20: #{_lambda_.1} parent=11 // pred_fallthru
          _
        // Predicated region
        $region21: #{_lambda_.1} parent=11 // pred_check
          %p165 = pneg %p116
        $region22: #{_lambda_.1} parent=11 // pred_check_branch
          %167 = sbr.rel (%p165) target = $region24
        $region23: #{_lambda_.1} parent=11 // pred_region
          _
        $region24: #{_lambda_.1} parent=11 // pred_fallthru
          _
      $region12: #{_lambda_.1} parent=5 // pred_fallthru
        _
      %p168 = scmp.lt.s32.totalorder %s13, 2
      // Predicated region
      $region25: #{_lambda_.1} parent=5 // pred_check
        %p169 = pneg %p168
      $region26: #{_lambda_.1} parent=5 // pred_check_branch
        %171 = sbr.rel (%p169) target = $region28
      $region27: #{_lambda_.1} parent=5 // pred_region
        // Predicated region
        $region29: #{_lambda_.1} parent=27 // pred_check
          %p172 = pneg %p47
        $region30: #{_lambda_.1} parent=27 // pred_check_branch
          %174 = sbr.rel (%p172) target = $region32
        $region31: #{_lambda_.1} parent=27 // pred_region
          %s175 = smul.u32 16, %s21
          %p176 = scmp.lt.s32.totalorder %s20, 1
          %s177 = scalar_select %p176, %s20, 1
          %p178 = scmp.lt.s32.totalorder %s175, 15
          %s179 = scalar_select %p178, %s175, 15
          %s180 = smul.addr %s179, 16
          %s181 = smul.addr %s177, 256
          %s182 = sadd.s32 %s180, %s181
          %s183 = smul.addr %s182, 8
          %s184 = scalar_lea.vmem %s0, %s183
          %s185 = smul.u32 16, %s21
        $region32: #{_lambda_.1} parent=27 // pred_fallthru
          _
      $region28: #{_lambda_.1} parent=5 // pred_fallthru
        _
      %p186 = scmp.le.s32.totalorder 1, %s13
      %p187 = scmp.lt.s32.totalorder %s13, 3
      %p188 = pnand %p186, %p187
      %p189 = pneg %p188
      // Predicated region
      $region33: #{_lambda_.1} parent=5 // pred_check
        _
      $region34: #{_lambda_.1} parent=5 // pred_check_branch
        %191 = sbr.rel (%p188) target = $region36
      $region35: #{_lambda_.1} parent=5 // pred_region
        %s192 = ssub.s32 %s13, 1
        %s193 = smul.u32 16, %s23
        %p194 = scmp.lt.s32.totalorder %s22, 1
        %s195 = scalar_select %p194, %s22, 1
        %p196 = scmp.lt.s32.totalorder %s193, 15
        %s197 = scalar_select %p196, %s193, 15
        %s198 = smul.addr %s197, 16
        %s199 = smul.addr %s195, 256
        %s200 = sadd.s32 %s198, %s199
        %s201 = smul.addr %s200, 8
        %s202 = scalar_lea.vmem %s0, %s201
        %p203 = pneg %p53
        %p204 = pneg %p50
        %p205 = pneg %p74
        %p206 = pneg %p71
        %p207 = pneg %p95
        %p208 = pneg %p92
        %p209 = pneg %p116
        %p210 = pneg %p113
        %p211 = pneg %p144
        %p212 = pneg %p141
        %s213 = sand.u32 %s131, 1
        %s214 = scalar_lea.sflag [#allocation3], %s213
        %s215 = sand.u32 %s131, 1
        %s216 = smul.addr %s215, 256
        %s217 = scalar_lea.vmem [#allocation2], %s216
        %s218 = smul.u32 16, %s23
        %p219 = scmp.lt.s32.totalorder %s22, 1
        %s220 = scalar_select %p219, %s22, 1
        %p221 = scmp.lt.s32.totalorder %s218, 15
        %s222 = scalar_select %p221, %s218, 15
        %s223 = smul.addr %s222, 16
        %s224 = smul.addr %s220, 256
        %s225 = sadd.s32 %s223, %s224
        %s226 = smul.addr %s225, 8
        %s227 = scalar_lea.vmem %s0, %s226
        %s228 = smul.u32 16, %s23
        %s229 = smul.u32 16, %s23
        %v230 = vld [vmem:[%s1] sm:$0xf]
        %v231 = vld [vmem:[%s2] sm:$0xf]
        %v232 = vld [vmem:[%s227] sm:$0xff]
        %v233 = vld [vmem:[%s227 + $0x8] sm:$0xff]
        %v234 = vld [vmem:[%s227 + $0x10] sm:$0xff]
        %v235 = vld [vmem:[%s227 + $0x18] sm:$0xff]
        %v236 = vld [vmem:[%s227 + $0x20] sm:$0xff]
        %v237 = vld [vmem:[%s227 + $0x28] sm:$0xff]
        %v238 = vld [vmem:[%s227 + $0x30] sm:$0xff]
        %v239 = vld [vmem:[%s227 + $0x38] sm:$0xff]
        %v240 = vld [vmem:[%s227 + $0x80] sm:$0xff]
        %v241 = vld [vmem:[%s227 + $0x88] sm:$0xff]
        %v242 = vld [vmem:[%s227 + $0x90] sm:$0xff]
        %v243 = vld [vmem:[%s227 + $0x98] sm:$0xff]
        %v244 = vld [vmem:[%s227 + $0xa0] sm:$0xff]
        %v245 = vld [vmem:[%s227 + $0xa8] sm:$0xff]
        %v246 = vld [vmem:[%s227 + $0xb0] sm:$0xff]
        %v247 = vld [vmem:[%s227 + $0xb8] sm:$0xff]
        %v248 = vld [vmem:[%s227 + $0x100] sm:$0xff]
        %v249 = vld [vmem:[%s227 + $0x108] sm:$0xff]
        %v250 = vld [vmem:[%s227 + $0x110] sm:$0xff]
        %v251 = vld [vmem:[%s227 + $0x118] sm:$0xff]
        %v252 = vld [vmem:[%s227 + $0x120] sm:$0xff]
        %v253 = vld [vmem:[%s227 + $0x128] sm:$0xff]
        %v254 = vld [vmem:[%s227 + $0x130] sm:$0xff]
        %v255 = vld [vmem:[%s227 + $0x138] sm:$0xff]
        %v256 = vld [vmem:[%s227 + $0x180] sm:$0xff]
        %v257 = vld [vmem:[%s227 + $0x188] sm:$0xff]
        %v258 = vld [vmem:[%s227 + $0x190] sm:$0xff]
        %v259 = vld [vmem:[%s227 + $0x198] sm:$0xff]
        %v260 = vld [vmem:[%s227 + $0x1a0] sm:$0xff]
        %v261 = vld [vmem:[%s227 + $0x1a8] sm:$0xff]
        %v262 = vld [vmem:[%s227 + $0x1b0] sm:$0xff]
        %v263 = vld [vmem:[%s227 + $0x1b8] sm:$0xff]
        %v264 = vld [vmem:[%s227 + $0x200] sm:$0xff]
        %v265 = vld [vmem:[%s227 + $0x208] sm:$0xff]
        %v266 = vld [vmem:[%s227 + $0x210] sm:$0xff]
        %v267 = vld [vmem:[%s227 + $0x218] sm:$0xff]
        %v268 = vld [vmem:[%s227 + $0x220] sm:$0xff]
        %v269 = vld [vmem:[%s227 + $0x228] sm:$0xff]
        %v270 = vld [vmem:[%s227 + $0x230] sm:$0xff]
        %v271 = vld [vmem:[%s227 + $0x238] sm:$0xff]
        %v272 = vld [vmem:[%s227 + $0x280] sm:$0xff]
        %v273 = vld [vmem:[%s227 + $0x288] sm:$0xff]
        %v274 = vld [vmem:[%s227 + $0x290] sm:$0xff]
        %v275 = vld [vmem:[%s227 + $0x298] sm:$0xff]
        %v276 = vld [vmem:[%s227 + $0x2a0] sm:$0xff]
        %v277 = vld [vmem:[%s227 + $0x2a8] sm:$0xff]
        %v278 = vld [vmem:[%s227 + $0x2b0] sm:$0xff]
        %v279 = vld [vmem:[%s227 + $0x2b8] sm:$0xff]
        %v280 = vld [vmem:[%s227 + $0x300] sm:$0xff]
        %v281 = vld [vmem:[%s227 + $0x308] sm:$0xff]
        %v282 = vld [vmem:[%s227 + $0x310] sm:$0xff]
        %v283 = vld [vmem:[%s227 + $0x318] sm:$0xff]
        %v284 = vld [vmem:[%s227 + $0x320] sm:$0xff]
        %v285 = vld [vmem:[%s227 + $0x328] sm:$0xff]
        %v286 = vld [vmem:[%s227 + $0x330] sm:$0xff]
        %v287 = vld [vmem:[%s227 + $0x338] sm:$0xff]
        %v288 = vld [vmem:[%s227 + $0x380] sm:$0xff]
        %v289 = vld [vmem:[%s227 + $0x388] sm:$0xff]
        %v290 = vld [vmem:[%s227 + $0x390] sm:$0xff]
        %v291 = vld [vmem:[%s227 + $0x398] sm:$0xff]
        %v292 = vld [vmem:[%s227 + $0x3a0] sm:$0xff]
        %v293 = vld [vmem:[%s227 + $0x3a8] sm:$0xff]
        %v294 = vld [vmem:[%s227 + $0x3b0] sm:$0xff]
        %v295 = vld [vmem:[%s227 + $0x3b8] sm:$0xff]
        %v296 = vld [vmem:[%s227 + $0x400] sm:$0xff]
        %v297 = vld [vmem:[%s227 + $0x408] sm:$0xff]
        %v298 = vld [vmem:[%s227 + $0x410] sm:$0xff]
        %v299 = vld [vmem:[%s227 + $0x418] sm:$0xff]
        %v300 = vld [vmem:[%s227 + $0x420] sm:$0xff]
        %v301 = vld [vmem:[%s227 + $0x428] sm:$0xff]
        %v302 = vld [vmem:[%s227 + $0x430] sm:$0xff]
        %v303 = vld [vmem:[%s227 + $0x438] sm:$0xff]
        %v304 = vld [vmem:[%s227 + $0x480] sm:$0xff]
        %v305 = vld [vmem:[%s227 + $0x488] sm:$0xff]
        %v306 = vld [vmem:[%s227 + $0x490] sm:$0xff]
        %v307 = vld [vmem:[%s227 + $0x498] sm:$0xff]
        %v308 = vld [vmem:[%s227 + $0x4a0] sm:$0xff]
        %v309 = vld [vmem:[%s227 + $0x4a8] sm:$0xff]
        %v310 = vld [vmem:[%s227 + $0x4b0] sm:$0xff]
        %v311 = vld [vmem:[%s227 + $0x4b8] sm:$0xff]
        %v312 = vld [vmem:[%s227 + $0x500] sm:$0xff]
        %v313 = vld [vmem:[%s227 + $0x508] sm:$0xff]
        %v314 = vld [vmem:[%s227 + $0x510] sm:$0xff]
        %v315 = vld [vmem:[%s227 + $0x518] sm:$0xff]
        %v316 = vld [vmem:[%s227 + $0x520] sm:$0xff]
        %v317 = vld [vmem:[%s227 + $0x528] sm:$0xff]
        %v318 = vld [vmem:[%s227 + $0x530] sm:$0xff]
        %v319 = vld [vmem:[%s227 + $0x538] sm:$0xff]
        %v320 = vld [vmem:[%s227 + $0x580] sm:$0xff]
        %v321 = vld [vmem:[%s227 + $0x588] sm:$0xff]
        %v322 = vld [vmem:[%s227 + $0x590] sm:$0xff]
        %v323 = vld [vmem:[%s227 + $0x598] sm:$0xff]
        %v324 = vld [vmem:[%s227 + $0x5a0] sm:$0xff]
        %v325 = vld [vmem:[%s227 + $0x5a8] sm:$0xff]
        %v326 = vld [vmem:[%s227 + $0x5b0] sm:$0xff]
        %v327 = vld [vmem:[%s227 + $0x5b8] sm:$0xff]
        %v328 = vld [vmem:[%s227 + $0x600] sm:$0xff]
        %v329 = vld [vmem:[%s227 + $0x608] sm:$0xff]
        %v330 = vld [vmem:[%s227 + $0x610] sm:$0xff]
        %v331 = vld [vmem:[%s227 + $0x618] sm:$0xff]
        %v332 = vld [vmem:[%s227 + $0x620] sm:$0xff]
        %v333 = vld [vmem:[%s227 + $0x628] sm:$0xff]
        %v334 = vld [vmem:[%s227 + $0x630] sm:$0xff]
        %v335 = vld [vmem:[%s227 + $0x638] sm:$0xff]
        %v336 = vld [vmem:[%s227 + $0x680] sm:$0xff]
        %v337 = vld [vmem:[%s227 + $0x688] sm:$0xff]
        %v338 = vld [vmem:[%s227 + $0x690] sm:$0xff]
        %v339 = vld [vmem:[%s227 + $0x698] sm:$0xff]
        %v340 = vld [vmem:[%s227 + $0x6a0] sm:$0xff]
        %v341 = vld [vmem:[%s227 + $0x6a8] sm:$0xff]
        %v342 = vld [vmem:[%s227 + $0x6b0] sm:$0xff]
        %v343 = vld [vmem:[%s227 + $0x6b8] sm:$0xff]
        %v344 = vld [vmem:[%s227 + $0x700] sm:$0xff]
        %v345 = vld [vmem:[%s227 + $0x708] sm:$0xff]
        %v346 = vld [vmem:[%s227 + $0x710] sm:$0xff]
        %v347 = vld [vmem:[%s227 + $0x718] sm:$0xff]
        %v348 = vld [vmem:[%s227 + $0x720] sm:$0xff]
        %v349 = vld [vmem:[%s227 + $0x728] sm:$0xff]
        %v350 = vld [vmem:[%s227 + $0x730] sm:$0xff]
        %v351 = vld [vmem:[%s227 + $0x738] sm:$0xff]
        %v352 = vld [vmem:[%s227 + $0x780] sm:$0xff]
        %v353 = vld [vmem:[%s227 + $0x788] sm:$0xff]
        %v354 = vld [vmem:[%s227 + $0x790] sm:$0xff]
        %v355 = vld [vmem:[%s227 + $0x798] sm:$0xff]
        %v356 = vld [vmem:[%s227 + $0x7a0] sm:$0xff]
        %v357 = vld [vmem:[%s227 + $0x7a8] sm:$0xff]
        %v358 = vld [vmem:[%s227 + $0x7b0] sm:$0xff]
        %v359 = vld [vmem:[%s227 + $0x7b8] sm:$0xff]
        %v361 = vlaneseq
        %v362 = vshrl.u32 %v361, 7
        %v363 = vsub.s32 0, %v362
        %v364 = vrot.slane %v230, %v363
        %v365 = vlaneseq
        %v366 = vshrl.u32 %v365, 7
        %v367 = vsub.s32 1, %v366
        %v368 = vrot.slane %v230, %v367
        %v369 = vlaneseq
        %v370 = vshrl.u32 %v369, 7
        %v371 = vsub.s32 2, %v370
        %v372 = vrot.slane %v230, %v371
        %v373 = vlaneseq
        %v374 = vshrl.u32 %v373, 7
        %v375 = vsub.s32 3, %v374
        %v376 = vrot.slane %v230, %v375
        %v381 = vmul.f32 %v232, %v364
        %v382 = vmul.f32 %v233, %v368
        %v383 = vmul.f32 %v234, %v372
        %v384 = vmul.f32 %v235, %v376
        %v385 = vmul.f32 %v236, %v364
        %v386 = vmul.f32 %v237, %v368
        %v387 = vmul.f32 %v238, %v372
        %v388 = vmul.f32 %v239, %v376
        %v389 = vmul.f32 %v240, %v364
        %v390 = vmul.f32 %v241, %v368
        %v391 = vmul.f32 %v242, %v372
        %v392 = vmul.f32 %v243, %v376
        %v393 = vmul.f32 %v244, %v364
        %v394 = vmul.f32 %v245, %v368
        %v395 = vmul.f32 %v246, %v372
        %v396 = vmul.f32 %v247, %v376
        %v397 = vmul.f32 %v248, %v364
        %v398 = vmul.f32 %v249, %v368
        %v399 = vmul.f32 %v250, %v372
        %v400 = vmul.f32 %v251, %v376
        %v401 = vmul.f32 %v252, %v364
        %v402 = vmul.f32 %v253, %v368
        %v403 = vmul.f32 %v254, %v372
        %v404 = vmul.f32 %v255, %v376
        %v405 = vmul.f32 %v256, %v364
        %v406 = vmul.f32 %v257, %v368
        %v407 = vmul.f32 %v258, %v372
        %v408 = vmul.f32 %v259, %v376
        %v409 = vmul.f32 %v260, %v364
        %v410 = vmul.f32 %v261, %v368
        %v411 = vmul.f32 %v262, %v372
        %v412 = vmul.f32 %v263, %v376
        %v413 = vmul.f32 %v264, %v364
        %v414 = vmul.f32 %v265, %v368
        %v415 = vmul.f32 %v266, %v372
        %v416 = vmul.f32 %v267, %v376
        %v417 = vmul.f32 %v268, %v364
        %v418 = vmul.f32 %v269, %v368
        %v419 = vmul.f32 %v270, %v372
        %v420 = vmul.f32 %v271, %v376
        %v421 = vmul.f32 %v272, %v364
        %v422 = vmul.f32 %v273, %v368
        %v423 = vmul.f32 %v274, %v372
        %v424 = vmul.f32 %v275, %v376
        %v425 = vmul.f32 %v276, %v364
        %v426 = vmul.f32 %v277, %v368
        %v427 = vmul.f32 %v278, %v372
        %v428 = vmul.f32 %v279, %v376
        %v429 = vmul.f32 %v280, %v364
        %v430 = vmul.f32 %v281, %v368
        %v431 = vmul.f32 %v282, %v372
        %v432 = vmul.f32 %v283, %v376
        %v433 = vmul.f32 %v284, %v364
        %v434 = vmul.f32 %v285, %v368
        %v435 = vmul.f32 %v286, %v372
        %v436 = vmul.f32 %v287, %v376
        %v437 = vmul.f32 %v288, %v364
        %v438 = vmul.f32 %v289, %v368
        %v439 = vmul.f32 %v290, %v372
        %v440 = vmul.f32 %v291, %v376
        %v441 = vmul.f32 %v292, %v364
        %v442 = vmul.f32 %v293, %v368
        %v443 = vmul.f32 %v294, %v372
        %v444 = vmul.f32 %v295, %v376
        %v445 = vmul.f32 %v296, %v364
        %v446 = vmul.f32 %v297, %v368
        %v447 = vmul.f32 %v298, %v372
        %v448 = vmul.f32 %v299, %v376
        %v449 = vmul.f32 %v300, %v364
        %v450 = vmul.f32 %v301, %v368
        %v451 = vmul.f32 %v302, %v372
        %v452 = vmul.f32 %v303, %v376
        %v453 = vmul.f32 %v304, %v364
        %v454 = vmul.f32 %v305, %v368
        %v455 = vmul.f32 %v306, %v372
        %v456 = vmul.f32 %v307, %v376
        %v457 = vmul.f32 %v308, %v364
        %v458 = vmul.f32 %v309, %v368
        %v459 = vmul.f32 %v310, %v372
        %v460 = vmul.f32 %v311, %v376
        %v461 = vmul.f32 %v312, %v364
        %v462 = vmul.f32 %v313, %v368
        %v463 = vmul.f32 %v314, %v372
        %v464 = vmul.f32 %v315, %v376
        %v465 = vmul.f32 %v316, %v364
        %v466 = vmul.f32 %v317, %v368
        %v467 = vmul.f32 %v318, %v372
        %v468 = vmul.f32 %v319, %v376
        %v469 = vmul.f32 %v320, %v364
        %v470 = vmul.f32 %v321, %v368
        %v471 = vmul.f32 %v322, %v372
        %v472 = vmul.f32 %v323, %v376
        %v473 = vmul.f32 %v324, %v364
        %v474 = vmul.f32 %v325, %v368
        %v475 = vmul.f32 %v326, %v372
        %v476 = vmul.f32 %v327, %v376
        %v477 = vmul.f32 %v328, %v364
        %v478 = vmul.f32 %v329, %v368
        %v479 = vmul.f32 %v330, %v372
        %v480 = vmul.f32 %v331, %v376
        %v481 = vmul.f32 %v332, %v364
        %v482 = vmul.f32 %v333, %v368
        %v483 = vmul.f32 %v334, %v372
        %v484 = vmul.f32 %v335, %v376
        %v485 = vmul.f32 %v336, %v364
        %v486 = vmul.f32 %v337, %v368
        %v487 = vmul.f32 %v338, %v372
        %v488 = vmul.f32 %v339, %v376
        %v489 = vmul.f32 %v340, %v364
        %v490 = vmul.f32 %v341, %v368
        %v491 = vmul.f32 %v342, %v372
        %v492 = vmul.f32 %v343, %v376
        %v493 = vmul.f32 %v344, %v364
        %v494 = vmul.f32 %v345, %v368
        %v495 = vmul.f32 %v346, %v372
        %v496 = vmul.f32 %v347, %v376
        %v497 = vmul.f32 %v348, %v364
        %v498 = vmul.f32 %v349, %v368
        %v499 = vmul.f32 %v350, %v372
        %v500 = vmul.f32 %v351, %v376
        %v501 = vmul.f32 %v352, %v364
        %v502 = vmul.f32 %v353, %v368
        %v503 = vmul.f32 %v354, %v372
        %v504 = vmul.f32 %v355, %v376
        %v505 = vmul.f32 %v356, %v364
        %v506 = vmul.f32 %v357, %v368
        %v507 = vmul.f32 %v358, %v372
        %v508 = vmul.f32 %v359, %v376
        %v510 = vlaneseq
        %v511 = vshrl.u32 %v510, 7
        %v512 = vsub.s32 0, %v511
        %v513 = vrot.slane %v231, %v512
        %v514 = vlaneseq
        %v515 = vshrl.u32 %v514, 7
        %v516 = vsub.s32 1, %v515
        %v517 = vrot.slane %v231, %v516
        %v518 = vlaneseq
        %v519 = vshrl.u32 %v518, 7
        %v520 = vsub.s32 2, %v519
        %v521 = vrot.slane %v231, %v520
        %v522 = vlaneseq
        %v523 = vshrl.u32 %v522, 7
        %v524 = vsub.s32 3, %v523
        %v525 = vrot.slane %v231, %v524
        %v530 = vadd.f32 %v381, %v513
        %v531 = vadd.f32 %v382, %v517
        %v532 = vadd.f32 %v383, %v521
        %v533 = vadd.f32 %v384, %v525
        %v534 = vadd.f32 %v385, %v513
        %v535 = vadd.f32 %v386, %v517
        %v536 = vadd.f32 %v387, %v521
        %v537 = vadd.f32 %v388, %v525
        %v538 = vadd.f32 %v389, %v513
        %v539 = vadd.f32 %v390, %v517
        %v540 = vadd.f32 %v391, %v521
        %v541 = vadd.f32 %v392, %v525
        %v542 = vadd.f32 %v393, %v513
        %v543 = vadd.f32 %v394, %v517
        %v544 = vadd.f32 %v395, %v521
        %v545 = vadd.f32 %v396, %v525
        %v546 = vadd.f32 %v397, %v513
        %v547 = vadd.f32 %v398, %v517
        %v548 = vadd.f32 %v399, %v521
        %v549 = vadd.f32 %v400, %v525
        %v550 = vadd.f32 %v401, %v513
        %v551 = vadd.f32 %v402, %v517
        %v552 = vadd.f32 %v403, %v521
        %v553 = vadd.f32 %v404, %v525
        %v554 = vadd.f32 %v405, %v513
        %v555 = vadd.f32 %v406, %v517
        %v556 = vadd.f32 %v407, %v521
        %v557 = vadd.f32 %v408, %v525
        %v558 = vadd.f32 %v409, %v513
        %v559 = vadd.f32 %v410, %v517
        %v560 = vadd.f32 %v411, %v521
        %v561 = vadd.f32 %v412, %v525
        %v562 = vadd.f32 %v413, %v513
        %v563 = vadd.f32 %v414, %v517
        %v564 = vadd.f32 %v415, %v521
        %v565 = vadd.f32 %v416, %v525
        %v566 = vadd.f32 %v417, %v513
        %v567 = vadd.f32 %v418, %v517
        %v568 = vadd.f32 %v419, %v521
        %v569 = vadd.f32 %v420, %v525
        %v570 = vadd.f32 %v421, %v513
        %v571 = vadd.f32 %v422, %v517
        %v572 = vadd.f32 %v423, %v521
        %v573 = vadd.f32 %v424, %v525
        %v574 = vadd.f32 %v425, %v513
        %v575 = vadd.f32 %v426, %v517
        %v576 = vadd.f32 %v427, %v521
        %v577 = vadd.f32 %v428, %v525
        %v578 = vadd.f32 %v429, %v513
        %v579 = vadd.f32 %v430, %v517
        %v580 = vadd.f32 %v431, %v521
        %v581 = vadd.f32 %v432, %v525
        %v582 = vadd.f32 %v433, %v513
        %v583 = vadd.f32 %v434, %v517
        %v584 = vadd.f32 %v435, %v521
        %v585 = vadd.f32 %v436, %v525
        %v586 = vadd.f32 %v437, %v513
        %v587 = vadd.f32 %v438, %v517
        %v588 = vadd.f32 %v439, %v521
        %v589 = vadd.f32 %v440, %v525
        %v590 = vadd.f32 %v441, %v513
        %v591 = vadd.f32 %v442, %v517
        %v592 = vadd.f32 %v443, %v521
        %v593 = vadd.f32 %v444, %v525
        %v594 = vadd.f32 %v445, %v513
        %v595 = vadd.f32 %v446, %v517
        %v596 = vadd.f32 %v447, %v521
        %v597 = vadd.f32 %v448, %v525
        %v598 = vadd.f32 %v449, %v513
        %v599 = vadd.f32 %v450, %v517
        %v600 = vadd.f32 %v451, %v521
        %v601 = vadd.f32 %v452, %v525
        %v602 = vadd.f32 %v453, %v513
        %v603 = vadd.f32 %v454, %v517
        %v604 = vadd.f32 %v455, %v521
        %v605 = vadd.f32 %v456, %v525
        %v606 = vadd.f32 %v457, %v513
        %v607 = vadd.f32 %v458, %v517
        %v608 = vadd.f32 %v459, %v521
        %v609 = vadd.f32 %v460, %v525
        %v610 = vadd.f32 %v461, %v513
        %v611 = vadd.f32 %v462, %v517
        %v612 = vadd.f32 %v463, %v521
        %v613 = vadd.f32 %v464, %v525
        %v614 = vadd.f32 %v465, %v513
        %v615 = vadd.f32 %v466, %v517
        %v616 = vadd.f32 %v467, %v521
        %v617 = vadd.f32 %v468, %v525
        %v618 = vadd.f32 %v469, %v513
        %v619 = vadd.f32 %v470, %v517
        %v620 = vadd.f32 %v471, %v521
        %v621 = vadd.f32 %v472, %v525
        %v622 = vadd.f32 %v473, %v513
        %v623 = vadd.f32 %v474, %v517
        %v624 = vadd.f32 %v475, %v521
        %v625 = vadd.f32 %v476, %v525
        %v626 = vadd.f32 %v477, %v513
        %v627 = vadd.f32 %v478, %v517
        %v628 = vadd.f32 %v479, %v521
        %v629 = vadd.f32 %v480, %v525
        %v630 = vadd.f32 %v481, %v513
        %v631 = vadd.f32 %v482, %v517
        %v632 = vadd.f32 %v483, %v521
        %v633 = vadd.f32 %v484, %v525
        %v634 = vadd.f32 %v485, %v513
        %v635 = vadd.f32 %v486, %v517
        %v636 = vadd.f32 %v487, %v521
        %v637 = vadd.f32 %v488, %v525
        %v638 = vadd.f32 %v489, %v513
        %v639 = vadd.f32 %v490, %v517
        %v640 = vadd.f32 %v491, %v521
        %v641 = vadd.f32 %v492, %v525
        %v642 = vadd.f32 %v493, %v513
        %v643 = vadd.f32 %v494, %v517
        %v644 = vadd.f32 %v495, %v521
        %v645 = vadd.f32 %v496, %v525
        %v646 = vadd.f32 %v497, %v513
        %v647 = vadd.f32 %v498, %v517
        %v648 = vadd.f32 %v499, %v521
        %v649 = vadd.f32 %v500, %v525
        %v650 = vadd.f32 %v501, %v513
        %v651 = vadd.f32 %v502, %v517
        %v652 = vadd.f32 %v503, %v521
        %v653 = vadd.f32 %v504, %v525
        %v654 = vadd.f32 %v505, %v513
        %v655 = vadd.f32 %v506, %v517
        %v656 = vadd.f32 %v507, %v521
        %v657 = vadd.f32 %v508, %v525
        %v658 = vmax.f32 %v530, 0.0
        %v659 = vmax.f32 %v531, 0.0
        %v660 = vmax.f32 %v532, 0.0
        %v661 = vmax.f32 %v533, 0.0
        %v662 = vmax.f32 %v534, 0.0
        %v663 = vmax.f32 %v535, 0.0
        %v664 = vmax.f32 %v536, 0.0
        %v665 = vmax.f32 %v537, 0.0
        %v666 = vmax.f32 %v538, 0.0
        %v667 = vmax.f32 %v539, 0.0
        %v668 = vmax.f32 %v540, 0.0
        %v669 = vmax.f32 %v541, 0.0
        %v670 = vmax.f32 %v542, 0.0
        %v671 = vmax.f32 %v543, 0.0
        %v672 = vmax.f32 %v544, 0.0
        %v673 = vmax.f32 %v545, 0.0
        %v674 = vmax.f32 %v546, 0.0
        %v675 = vmax.f32 %v547, 0.0
        %v676 = vmax.f32 %v548, 0.0
        %v677 = vmax.f32 %v549, 0.0
        %v678 = vmax.f32 %v550, 0.0
        %v679 = vmax.f32 %v551, 0.0
        %v680 = vmax.f32 %v552, 0.0
        %v681 = vmax.f32 %v553, 0.0
        %v682 = vmax.f32 %v554, 0.0
        %v683 = vmax.f32 %v555, 0.0
        %v684 = vmax.f32 %v556, 0.0
        %v685 = vmax.f32 %v557, 0.0
        %v686 = vmax.f32 %v558, 0.0
        %v687 = vmax.f32 %v559, 0.0
        %v688 = vmax.f32 %v560, 0.0
        %v689 = vmax.f32 %v561, 0.0
        %v690 = vmax.f32 %v562, 0.0
        %v691 = vmax.f32 %v563, 0.0
        %v692 = vmax.f32 %v564, 0.0
        %v693 = vmax.f32 %v565, 0.0
        %v694 = vmax.f32 %v566, 0.0
        %v695 = vmax.f32 %v567, 0.0
        %v696 = vmax.f32 %v568, 0.0
        %v697 = vmax.f32 %v569, 0.0
        %v698 = vmax.f32 %v570, 0.0
        %v699 = vmax.f32 %v571, 0.0
        %v700 = vmax.f32 %v572, 0.0
        %v701 = vmax.f32 %v573, 0.0
        %v702 = vmax.f32 %v574, 0.0
        %v703 = vmax.f32 %v575, 0.0
        %v704 = vmax.f32 %v576, 0.0
        %v705 = vmax.f32 %v577, 0.0
        %v706 = vmax.f32 %v578, 0.0
        %v707 = vmax.f32 %v579, 0.0
        %v708 = vmax.f32 %v580, 0.0
        %v709 = vmax.f32 %v581, 0.0
        %v710 = vmax.f32 %v582, 0.0
        %v711 = vmax.f32 %v583, 0.0
        %v712 = vmax.f32 %v584, 0.0
        %v713 = vmax.f32 %v585, 0.0
        %v714 = vmax.f32 %v586, 0.0
        %v715 = vmax.f32 %v587, 0.0
        %v716 = vmax.f32 %v588, 0.0
        %v717 = vmax.f32 %v589, 0.0
        %v718 = vmax.f32 %v590, 0.0
        %v719 = vmax.f32 %v591, 0.0
        %v720 = vmax.f32 %v592, 0.0
        %v721 = vmax.f32 %v593, 0.0
        %v722 = vmax.f32 %v594, 0.0
        %v723 = vmax.f32 %v595, 0.0
        %v724 = vmax.f32 %v596, 0.0
        %v725 = vmax.f32 %v597, 0.0
        %v726 = vmax.f32 %v598, 0.0
        %v727 = vmax.f32 %v599, 0.0
        %v728 = vmax.f32 %v600, 0.0
        %v729 = vmax.f32 %v601, 0.0
        %v730 = vmax.f32 %v602, 0.0
        %v731 = vmax.f32 %v603, 0.0
        %v732 = vmax.f32 %v604, 0.0
        %v733 = vmax.f32 %v605, 0.0
        %v734 = vmax.f32 %v606, 0.0
        %v735 = vmax.f32 %v607, 0.0
        %v736 = vmax.f32 %v608, 0.0
        %v737 = vmax.f32 %v609, 0.0
        %v738 = vmax.f32 %v610, 0.0
        %v739 = vmax.f32 %v611, 0.0
        %v740 = vmax.f32 %v612, 0.0
        %v741 = vmax.f32 %v613, 0.0
        %v742 = vmax.f32 %v614, 0.0
        %v743 = vmax.f32 %v615, 0.0
        %v744 = vmax.f32 %v616, 0.0
        %v745 = vmax.f32 %v617, 0.0
        %v746 = vmax.f32 %v618, 0.0
        %v747 = vmax.f32 %v619, 0.0
        %v748 = vmax.f32 %v620, 0.0
        %v749 = vmax.f32 %v621, 0.0
        %v750 = vmax.f32 %v622, 0.0
        %v751 = vmax.f32 %v623, 0.0
        %v752 = vmax.f32 %v624, 0.0
        %v753 = vmax.f32 %v625, 0.0
        %v754 = vmax.f32 %v626, 0.0
        %v755 = vmax.f32 %v627, 0.0
        %v756 = vmax.f32 %v628, 0.0
        %v757 = vmax.f32 %v629, 0.0
        %v758 = vmax.f32 %v630, 0.0
        %v759 = vmax.f32 %v631, 0.0
        %v760 = vmax.f32 %v632, 0.0
        %v761 = vmax.f32 %v633, 0.0
        %v762 = vmax.f32 %v634, 0.0
        %v763 = vmax.f32 %v635, 0.0
        %v764 = vmax.f32 %v636, 0.0
        %v765 = vmax.f32 %v637, 0.0
        %v766 = vmax.f32 %v638, 0.0
        %v767 = vmax.f32 %v639, 0.0
        %v768 = vmax.f32 %v640, 0.0
        %v769 = vmax.f32 %v641, 0.0
        %v770 = vmax.f32 %v642, 0.0
        %v771 = vmax.f32 %v643, 0.0
        %v772 = vmax.f32 %v644, 0.0
        %v773 = vmax.f32 %v645, 0.0
        %v774 = vmax.f32 %v646, 0.0
        %v775 = vmax.f32 %v647, 0.0
        %v776 = vmax.f32 %v648, 0.0
        %v777 = vmax.f32 %v649, 0.0
        %v778 = vmax.f32 %v650, 0.0
        %v779 = vmax.f32 %v651, 0.0
        %v780 = vmax.f32 %v652, 0.0
        %v781 = vmax.f32 %v653, 0.0
        %v782 = vmax.f32 %v654, 0.0
        %v783 = vmax.f32 %v655, 0.0
        %v784 = vmax.f32 %v656, 0.0
        %v785 = vmax.f32 %v657, 0.0
        %s786 = scalar_lea.vmem %s227, 64
        %v787 = vld [vmem:[%s786] sm:$0xff]
        %v788 = vld [vmem:[%s786 + $0x8] sm:$0xff]
        %v789 = vld [vmem:[%s786 + $0x10] sm:$0xff]
        %v790 = vld [vmem:[%s786 + $0x18] sm:$0xff]
        %v791 = vld [vmem:[%s786 + $0x20] sm:$0xff]
        %v792 = vld [vmem:[%s786 + $0x28] sm:$0xff]
        %v793 = vld [vmem:[%s786 + $0x30] sm:$0xff]
        %v794 = vld [vmem:[%s786 + $0x38] sm:$0xff]
        %v795 = vld [vmem:[%s786 + $0x80] sm:$0xff]
        %v796 = vld [vmem:[%s786 + $0x88] sm:$0xff]
        %v797 = vld [vmem:[%s786 + $0x90] sm:$0xff]
        %v798 = vld [vmem:[%s786 + $0x98] sm:$0xff]
        %v799 = vld [vmem:[%s786 + $0xa0] sm:$0xff]
        %v800 = vld [vmem:[%s786 + $0xa8] sm:$0xff]
        %v801 = vld [vmem:[%s786 + $0xb0] sm:$0xff]
        %v802 = vld [vmem:[%s786 + $0xb8] sm:$0xff]
        %v803 = vld [vmem:[%s786 + $0x100] sm:$0xff]
        %v804 = vld [vmem:[%s786 + $0x108] sm:$0xff]
        %v805 = vld [vmem:[%s786 + $0x110] sm:$0xff]
        %v806 = vld [vmem:[%s786 + $0x118] sm:$0xff]
        %v807 = vld [vmem:[%s786 + $0x120] sm:$0xff]
        %v808 = vld [vmem:[%s786 + $0x128] sm:$0xff]
        %v809 = vld [vmem:[%s786 + $0x130] sm:$0xff]
        %v810 = vld [vmem:[%s786 + $0x138] sm:$0xff]
        %v811 = vld [vmem:[%s786 + $0x180] sm:$0xff]
        %v812 = vld [vmem:[%s786 + $0x188] sm:$0xff]
        %v813 = vld [vmem:[%s786 + $0x190] sm:$0xff]
        %v814 = vld [vmem:[%s786 + $0x198] sm:$0xff]
        %v815 = vld [vmem:[%s786 + $0x1a0] sm:$0xff]
        %v816 = vld [vmem:[%s786 + $0x1a8] sm:$0xff]
        %v817 = vld [vmem:[%s786 + $0x1b0] sm:$0xff]
        %v818 = vld [vmem:[%s786 + $0x1b8] sm:$0xff]
        %v819 = vld [vmem:[%s786 + $0x200] sm:$0xff]
        %v820 = vld [vmem:[%s786 + $0x208] sm:$0xff]
        %v821 = vld [vmem:[%s786 + $0x210] sm:$0xff]
        %v822 = vld [vmem:[%s786 + $0x218] sm:$0xff]
        %v823 = vld [vmem:[%s786 + $0x220] sm:$0xff]
        %v824 = vld [vmem:[%s786 + $0x228] sm:$0xff]
        %v825 = vld [vmem:[%s786 + $0x230] sm:$0xff]
        %v826 = vld [vmem:[%s786 + $0x238] sm:$0xff]
        %v827 = vld [vmem:[%s786 + $0x280] sm:$0xff]
        %v828 = vld [vmem:[%s786 + $0x288] sm:$0xff]
        %v829 = vld [vmem:[%s786 + $0x290] sm:$0xff]
        %v830 = vld [vmem:[%s786 + $0x298] sm:$0xff]
        %v831 = vld [vmem:[%s786 + $0x2a0] sm:$0xff]
        %v832 = vld [vmem:[%s786 + $0x2a8] sm:$0xff]
        %v833 = vld [vmem:[%s786 + $0x2b0] sm:$0xff]
        %v834 = vld [vmem:[%s786 + $0x2b8] sm:$0xff]
        %v835 = vld [vmem:[%s786 + $0x300] sm:$0xff]
        %v836 = vld [vmem:[%s786 + $0x308] sm:$0xff]
        %v837 = vld [vmem:[%s786 + $0x310] sm:$0xff]
        %v838 = vld [vmem:[%s786 + $0x318] sm:$0xff]
        %v839 = vld [vmem:[%s786 + $0x320] sm:$0xff]
        %v840 = vld [vmem:[%s786 + $0x328] sm:$0xff]
        %v841 = vld [vmem:[%s786 + $0x330] sm:$0xff]
        %v842 = vld [vmem:[%s786 + $0x338] sm:$0xff]
        %v843 = vld [vmem:[%s786 + $0x380] sm:$0xff]
        %v844 = vld [vmem:[%s786 + $0x388] sm:$0xff]
        %v845 = vld [vmem:[%s786 + $0x390] sm:$0xff]
        %v846 = vld [vmem:[%s786 + $0x398] sm:$0xff]
        %v847 = vld [vmem:[%s786 + $0x3a0] sm:$0xff]
        %v848 = vld [vmem:[%s786 + $0x3a8] sm:$0xff]
        %v849 = vld [vmem:[%s786 + $0x3b0] sm:$0xff]
        %v850 = vld [vmem:[%s786 + $0x3b8] sm:$0xff]
        %v851 = vld [vmem:[%s786 + $0x400] sm:$0xff]
        %v852 = vld [vmem:[%s786 + $0x408] sm:$0xff]
        %v853 = vld [vmem:[%s786 + $0x410] sm:$0xff]
        %v854 = vld [vmem:[%s786 + $0x418] sm:$0xff]
        %v855 = vld [vmem:[%s786 + $0x420] sm:$0xff]
        %v856 = vld [vmem:[%s786 + $0x428] sm:$0xff]
        %v857 = vld [vmem:[%s786 + $0x430] sm:$0xff]
        %v858 = vld [vmem:[%s786 + $0x438] sm:$0xff]
        %v859 = vld [vmem:[%s786 + $0x480] sm:$0xff]
        %v860 = vld [vmem:[%s786 + $0x488] sm:$0xff]
        %v861 = vld [vmem:[%s786 + $0x490] sm:$0xff]
        %v862 = vld [vmem:[%s786 + $0x498] sm:$0xff]
        %v863 = vld [vmem:[%s786 + $0x4a0] sm:$0xff]
        %v864 = vld [vmem:[%s786 + $0x4a8] sm:$0xff]
        %v865 = vld [vmem:[%s786 + $0x4b0] sm:$0xff]
        %v866 = vld [vmem:[%s786 + $0x4b8] sm:$0xff]
        %v867 = vld [vmem:[%s786 + $0x500] sm:$0xff]
        %v868 = vld [vmem:[%s786 + $0x508] sm:$0xff]
        %v869 = vld [vmem:[%s786 + $0x510] sm:$0xff]
        %v870 = vld [vmem:[%s786 + $0x518] sm:$0xff]
        %v871 = vld [vmem:[%s786 + $0x520] sm:$0xff]
        %v872 = vld [vmem:[%s786 + $0x528] sm:$0xff]
        %v873 = vld [vmem:[%s786 + $0x530] sm:$0xff]
        %v874 = vld [vmem:[%s786 + $0x538] sm:$0xff]
        %v875 = vld [vmem:[%s786 + $0x580] sm:$0xff]
        %v876 = vld [vmem:[%s786 + $0x588] sm:$0xff]
        %v877 = vld [vmem:[%s786 + $0x590] sm:$0xff]
        %v878 = vld [vmem:[%s786 + $0x598] sm:$0xff]
        %v879 = vld [vmem:[%s786 + $0x5a0] sm:$0xff]
        %v880 = vld [vmem:[%s786 + $0x5a8] sm:$0xff]
        %v881 = vld [vmem:[%s786 + $0x5b0] sm:$0xff]
        %v882 = vld [vmem:[%s786 + $0x5b8] sm:$0xff]
        %v883 = vld [vmem:[%s786 + $0x600] sm:$0xff]
        %v884 = vld [vmem:[%s786 + $0x608] sm:$0xff]
        %v885 = vld [vmem:[%s786 + $0x610] sm:$0xff]
        %v886 = vld [vmem:[%s786 + $0x618] sm:$0xff]
        %v887 = vld [vmem:[%s786 + $0x620] sm:$0xff]
        %v888 = vld [vmem:[%s786 + $0x628] sm:$0xff]
        %v889 = vld [vmem:[%s786 + $0x630] sm:$0xff]
        %v890 = vld [vmem:[%s786 + $0x638] sm:$0xff]
        %v891 = vld [vmem:[%s786 + $0x680] sm:$0xff]
        %v892 = vld [vmem:[%s786 + $0x688] sm:$0xff]
        %v893 = vld [vmem:[%s786 + $0x690] sm:$0xff]
        %v894 = vld [vmem:[%s786 + $0x698] sm:$0xff]
        %v895 = vld [vmem:[%s786 + $0x6a0] sm:$0xff]
        %v896 = vld [vmem:[%s786 + $0x6a8] sm:$0xff]
        %v897 = vld [vmem:[%s786 + $0x6b0] sm:$0xff]
        %v898 = vld [vmem:[%s786 + $0x6b8] sm:$0xff]
        %v899 = vld [vmem:[%s786 + $0x700] sm:$0xff]
        %v900 = vld [vmem:[%s786 + $0x708] sm:$0xff]
        %v901 = vld [vmem:[%s786 + $0x710] sm:$0xff]
        %v902 = vld [vmem:[%s786 + $0x718] sm:$0xff]
        %v903 = vld [vmem:[%s786 + $0x720] sm:$0xff]
        %v904 = vld [vmem:[%s786 + $0x728] sm:$0xff]
        %v905 = vld [vmem:[%s786 + $0x730] sm:$0xff]
        %v906 = vld [vmem:[%s786 + $0x738] sm:$0xff]
        %v907 = vld [vmem:[%s786 + $0x780] sm:$0xff]
        %v908 = vld [vmem:[%s786 + $0x788] sm:$0xff]
        %v909 = vld [vmem:[%s786 + $0x790] sm:$0xff]
        %v910 = vld [vmem:[%s786 + $0x798] sm:$0xff]
        %v911 = vld [vmem:[%s786 + $0x7a0] sm:$0xff]
        %v912 = vld [vmem:[%s786 + $0x7a8] sm:$0xff]
        %v913 = vld [vmem:[%s786 + $0x7b0] sm:$0xff]
        %v914 = vld [vmem:[%s786 + $0x7b8] sm:$0xff]
        %v915 = vmul.f32 %v787, %v364
        %v916 = vmul.f32 %v788, %v368
        %v917 = vmul.f32 %v789, %v372
        %v918 = vmul.f32 %v790, %v376
        %v919 = vmul.f32 %v791, %v364
        %v920 = vmul.f32 %v792, %v368
        %v921 = vmul.f32 %v793, %v372
        %v922 = vmul.f32 %v794, %v376
        %v923 = vmul.f32 %v795, %v364
        %v924 = vmul.f32 %v796, %v368
        %v925 = vmul.f32 %v797, %v372
        %v926 = vmul.f32 %v798, %v376
        %v927 = vmul.f32 %v799, %v364
        %v928 = vmul.f32 %v800, %v368
        %v929 = vmul.f32 %v801, %v372
        %v930 = vmul.f32 %v802, %v376
        %v931 = vmul.f32 %v803, %v364
        %v932 = vmul.f32 %v804, %v368
        %v933 = vmul.f32 %v805, %v372
        %v934 = vmul.f32 %v806, %v376
        %v935 = vmul.f32 %v807, %v364
        %v936 = vmul.f32 %v808, %v368
        %v937 = vmul.f32 %v809, %v372
        %v938 = vmul.f32 %v810, %v376
        %v939 = vmul.f32 %v811, %v364
        %v940 = vmul.f32 %v812, %v368
        %v941 = vmul.f32 %v813, %v372
        %v942 = vmul.f32 %v814, %v376
        %v943 = vmul.f32 %v815, %v364
        %v944 = vmul.f32 %v816, %v368
        %v945 = vmul.f32 %v817, %v372
        %v946 = vmul.f32 %v818, %v376
        %v947 = vmul.f32 %v819, %v364
        %v948 = vmul.f32 %v820, %v368
        %v949 = vmul.f32 %v821, %v372
        %v950 = vmul.f32 %v822, %v376
        %v951 = vmul.f32 %v823, %v364
        %v952 = vmul.f32 %v824, %v368
        %v953 = vmul.f32 %v825, %v372
        %v954 = vmul.f32 %v826, %v376
        %v955 = vmul.f32 %v827, %v364
        %v956 = vmul.f32 %v828, %v368
        %v957 = vmul.f32 %v829, %v372
        %v958 = vmul.f32 %v830, %v376
        %v959 = vmul.f32 %v831, %v364
        %v960 = vmul.f32 %v832, %v368
        %v961 = vmul.f32 %v833, %v372
        %v962 = vmul.f32 %v834, %v376
        %v963 = vmul.f32 %v835, %v364
        %v964 = vmul.f32 %v836, %v368
        %v965 = vmul.f32 %v837, %v372
        %v966 = vmul.f32 %v838, %v376
        %v967 = vmul.f32 %v839, %v364
        %v968 = vmul.f32 %v840, %v368
        %v969 = vmul.f32 %v841, %v372
        %v970 = vmul.f32 %v842, %v376
        %v971 = vmul.f32 %v843, %v364
        %v972 = vmul.f32 %v844, %v368
        %v973 = vmul.f32 %v845, %v372
        %v974 = vmul.f32 %v846, %v376
        %v975 = vmul.f32 %v847, %v364
        %v976 = vmul.f32 %v848, %v368
        %v977 = vmul.f32 %v849, %v372
        %v978 = vmul.f32 %v850, %v376
        %v979 = vmul.f32 %v851, %v364
        %v980 = vmul.f32 %v852, %v368
        %v981 = vmul.f32 %v853, %v372
        %v982 = vmul.f32 %v854, %v376
        %v983 = vmul.f32 %v855, %v364
        %v984 = vmul.f32 %v856, %v368
        %v985 = vmul.f32 %v857, %v372
        %v986 = vmul.f32 %v858, %v376
        %v987 = vmul.f32 %v859, %v364
        %v988 = vmul.f32 %v860, %v368
        %v989 = vmul.f32 %v861, %v372
        %v990 = vmul.f32 %v862, %v376
        %v991 = vmul.f32 %v863, %v364
        %v992 = vmul.f32 %v864, %v368
        %v993 = vmul.f32 %v865, %v372
        %v994 = vmul.f32 %v866, %v376
        %v995 = vmul.f32 %v867, %v364
        %v996 = vmul.f32 %v868, %v368
        %v997 = vmul.f32 %v869, %v372
        %v998 = vmul.f32 %v870, %v376
        %v999 = vmul.f32 %v871, %v364
        %v1000 = vmul.f32 %v872, %v368
        %v1001 = vmul.f32 %v873, %v372
        %v1002 = vmul.f32 %v874, %v376
        %v1003 = vmul.f32 %v875, %v364
        %v1004 = vmul.f32 %v876, %v368
        %v1005 = vmul.f32 %v877, %v372
        %v1006 = vmul.f32 %v878, %v376
        %v1007 = vmul.f32 %v879, %v364
        %v1008 = vmul.f32 %v880, %v368
        %v1009 = vmul.f32 %v881, %v372
        %v1010 = vmul.f32 %v882, %v376
        %v1011 = vmul.f32 %v883, %v364
        %v1012 = vmul.f32 %v884, %v368
        %v1013 = vmul.f32 %v885, %v372
        %v1014 = vmul.f32 %v886, %v376
        %v1015 = vmul.f32 %v887, %v364
        %v1016 = vmul.f32 %v888, %v368
        %v1017 = vmul.f32 %v889, %v372
        %v1018 = vmul.f32 %v890, %v376
        %v1019 = vmul.f32 %v891, %v364
        %v1020 = vmul.f32 %v892, %v368
        %v1021 = vmul.f32 %v893, %v372
        %v1022 = vmul.f32 %v894, %v376
        %v1023 = vmul.f32 %v895, %v364
        %v1024 = vmul.f32 %v896, %v368
        %v1025 = vmul.f32 %v897, %v372
        %v1026 = vmul.f32 %v898, %v376
        %v1027 = vmul.f32 %v899, %v364
        %v1028 = vmul.f32 %v900, %v368
        %v1029 = vmul.f32 %v901, %v372
        %v1030 = vmul.f32 %v902, %v376
        %v1031 = vmul.f32 %v903, %v364
        %v1032 = vmul.f32 %v904, %v368
        %v1033 = vmul.f32 %v905, %v372
        %v1034 = vmul.f32 %v906, %v376
        %v1035 = vmul.f32 %v907, %v364
        %v1036 = vmul.f32 %v908, %v368
        %v1037 = vmul.f32 %v909, %v372
        %v1038 = vmul.f32 %v910, %v376
        %v1039 = vmul.f32 %v911, %v364
        %v1040 = vmul.f32 %v912, %v368
        %v1041 = vmul.f32 %v913, %v372
        %v1042 = vmul.f32 %v914, %v376
        %v1043 = vadd.f32 %v915, %v513
        %v1044 = vadd.f32 %v916, %v517
        %v1045 = vadd.f32 %v917, %v521
        %v1046 = vadd.f32 %v918, %v525
        %v1047 = vadd.f32 %v919, %v513
        %v1048 = vadd.f32 %v920, %v517
        %v1049 = vadd.f32 %v921, %v521
        %v1050 = vadd.f32 %v922, %v525
        %v1051 = vadd.f32 %v923, %v513
        %v1052 = vadd.f32 %v924, %v517
        %v1053 = vadd.f32 %v925, %v521
        %v1054 = vadd.f32 %v926, %v525
        %v1055 = vadd.f32 %v927, %v513
        %v1056 = vadd.f32 %v928, %v517
        %v1057 = vadd.f32 %v929, %v521
        %v1058 = vadd.f32 %v930, %v525
        %v1059 = vadd.f32 %v931, %v513
        %v1060 = vadd.f32 %v932, %v517
        %v1061 = vadd.f32 %v933, %v521
        %v1062 = vadd.f32 %v934, %v525
        %v1063 = vadd.f32 %v935, %v513
        %v1064 = vadd.f32 %v936, %v517
        %v1065 = vadd.f32 %v937, %v521
        %v1066 = vadd.f32 %v938, %v525
        %v1067 = vadd.f32 %v939, %v513
        %v1068 = vadd.f32 %v940, %v517
        %v1069 = vadd.f32 %v941, %v521
        %v1070 = vadd.f32 %v942, %v525
        %v1071 = vadd.f32 %v943, %v513
        %v1072 = vadd.f32 %v944, %v517
        %v1073 = vadd.f32 %v945, %v521
        %v1074 = vadd.f32 %v946, %v525
        %v1075 = vadd.f32 %v947, %v513
        %v1076 = vadd.f32 %v948, %v517
        %v1077 = vadd.f32 %v949, %v521
        %v1078 = vadd.f32 %v950, %v525
        %v1079 = vadd.f32 %v951, %v513
        %v1080 = vadd.f32 %v952, %v517
        %v1081 = vadd.f32 %v953, %v521
        %v1082 = vadd.f32 %v954, %v525
        %v1083 = vadd.f32 %v955, %v513
        %v1084 = vadd.f32 %v956, %v517
        %v1085 = vadd.f32 %v957, %v521
        %v1086 = vadd.f32 %v958, %v525
        %v1087 = vadd.f32 %v959, %v513
        %v1088 = vadd.f32 %v960, %v517
        %v1089 = vadd.f32 %v961, %v521
        %v1090 = vadd.f32 %v962, %v525
        %v1091 = vadd.f32 %v963, %v513
        %v1092 = vadd.f32 %v964, %v517
        %v1093 = vadd.f32 %v965, %v521
        %v1094 = vadd.f32 %v966, %v525
        %v1095 = vadd.f32 %v967, %v513
        %v1096 = vadd.f32 %v968, %v517
        %v1097 = vadd.f32 %v969, %v521
        %v1098 = vadd.f32 %v970, %v525
        %v1099 = vadd.f32 %v971, %v513
        %v1100 = vadd.f32 %v972, %v517
        %v1101 = vadd.f32 %v973, %v521
        %v1102 = vadd.f32 %v974, %v525
        %v1103 = vadd.f32 %v975, %v513
        %v1104 = vadd.f32 %v976, %v517
        %v1105 = vadd.f32 %v977, %v521
        %v1106 = vadd.f32 %v978, %v525
        %v1107 = vadd.f32 %v979, %v513
        %v1108 = vadd.f32 %v980, %v517
        %v1109 = vadd.f32 %v981, %v521
        %v1110 = vadd.f32 %v982, %v525
        %v1111 = vadd.f32 %v983, %v513
        %v1112 = vadd.f32 %v984, %v517
        %v1113 = vadd.f32 %v985, %v521
        %v1114 = vadd.f32 %v986, %v525
        %v1115 = vadd.f32 %v987, %v513
        %v1116 = vadd.f32 %v988, %v517
        %v1117 = vadd.f32 %v989, %v521
        %v1118 = vadd.f32 %v990, %v525
        %v1119 = vadd.f32 %v991, %v513
        %v1120 = vadd.f32 %v992, %v517
        %v1121 = vadd.f32 %v993, %v521
        %v1122 = vadd.f32 %v994, %v525
        %v1123 = vadd.f32 %v995, %v513
        %v1124 = vadd.f32 %v996, %v517
        %v1125 = vadd.f32 %v997, %v521
        %v1126 = vadd.f32 %v998, %v525
        %v1127 = vadd.f32 %v999, %v513
        %v1128 = vadd.f32 %v1000, %v517
        %v1129 = vadd.f32 %v1001, %v521
        %v1130 = vadd.f32 %v1002, %v525
        %v1131 = vadd.f32 %v1003, %v513
        %v1132 = vadd.f32 %v1004, %v517
        %v1133 = vadd.f32 %v1005, %v521
        %v1134 = vadd.f32 %v1006, %v525
        %v1135 = vadd.f32 %v1007, %v513
        %v1136 = vadd.f32 %v1008, %v517
        %v1137 = vadd.f32 %v1009, %v521
        %v1138 = vadd.f32 %v1010, %v525
        %v1139 = vadd.f32 %v1011, %v513
        %v1140 = vadd.f32 %v1012, %v517
        %v1141 = vadd.f32 %v1013, %v521
        %v1142 = vadd.f32 %v1014, %v525
        %v1143 = vadd.f32 %v1015, %v513
        %v1144 = vadd.f32 %v1016, %v517
        %v1145 = vadd.f32 %v1017, %v521
        %v1146 = vadd.f32 %v1018, %v525
        %v1147 = vadd.f32 %v1019, %v513
        %v1148 = vadd.f32 %v1020, %v517
        %v1149 = vadd.f32 %v1021, %v521
        %v1150 = vadd.f32 %v1022, %v525
        %v1151 = vadd.f32 %v1023, %v513
        %v1152 = vadd.f32 %v1024, %v517
        %v1153 = vadd.f32 %v1025, %v521
        %v1154 = vadd.f32 %v1026, %v525
        %v1155 = vadd.f32 %v1027, %v513
        %v1156 = vadd.f32 %v1028, %v517
        %v1157 = vadd.f32 %v1029, %v521
        %v1158 = vadd.f32 %v1030, %v525
        %v1159 = vadd.f32 %v1031, %v513
        %v1160 = vadd.f32 %v1032, %v517
        %v1161 = vadd.f32 %v1033, %v521
        %v1162 = vadd.f32 %v1034, %v525
        %v1163 = vadd.f32 %v1035, %v513
        %v1164 = vadd.f32 %v1036, %v517
        %v1165 = vadd.f32 %v1037, %v521
        %v1166 = vadd.f32 %v1038, %v525
        %v1167 = vadd.f32 %v1039, %v513
        %v1168 = vadd.f32 %v1040, %v517
        %v1169 = vadd.f32 %v1041, %v521
        %v1170 = vadd.f32 %v1042, %v525
        %v1171 = vmax.f32 %v1043, 0.0
        %v1172 = vmax.f32 %v1044, 0.0
        %v1173 = vmax.f32 %v1045, 0.0
        %v1174 = vmax.f32 %v1046, 0.0
        %v1175 = vmax.f32 %v1047, 0.0
        %v1176 = vmax.f32 %v1048, 0.0
        %v1177 = vmax.f32 %v1049, 0.0
        %v1178 = vmax.f32 %v1050, 0.0
        %v1179 = vmax.f32 %v1051, 0.0
        %v1180 = vmax.f32 %v1052, 0.0
        %v1181 = vmax.f32 %v1053, 0.0
        %v1182 = vmax.f32 %v1054, 0.0
        %v1183 = vmax.f32 %v1055, 0.0
        %v1184 = vmax.f32 %v1056, 0.0
        %v1185 = vmax.f32 %v1057, 0.0
        %v1186 = vmax.f32 %v1058, 0.0
        %v1187 = vmax.f32 %v1059, 0.0
        %v1188 = vmax.f32 %v1060, 0.0
        %v1189 = vmax.f32 %v1061, 0.0
        %v1190 = vmax.f32 %v1062, 0.0
        %v1191 = vmax.f32 %v1063, 0.0
        %v1192 = vmax.f32 %v1064, 0.0
        %v1193 = vmax.f32 %v1065, 0.0
        %v1194 = vmax.f32 %v1066, 0.0
        %v1195 = vmax.f32 %v1067, 0.0
        %v1196 = vmax.f32 %v1068, 0.0
        %v1197 = vmax.f32 %v1069, 0.0
        %v1198 = vmax.f32 %v1070, 0.0
        %v1199 = vmax.f32 %v1071, 0.0
        %v1200 = vmax.f32 %v1072, 0.0
        %v1201 = vmax.f32 %v1073, 0.0
        %v1202 = vmax.f32 %v1074, 0.0
        %v1203 = vmax.f32 %v1075, 0.0
        %v1204 = vmax.f32 %v1076, 0.0
        %v1205 = vmax.f32 %v1077, 0.0
        %v1206 = vmax.f32 %v1078, 0.0
        %v1207 = vmax.f32 %v1079, 0.0
        %v1208 = vmax.f32 %v1080, 0.0
        %v1209 = vmax.f32 %v1081, 0.0
        %v1210 = vmax.f32 %v1082, 0.0
        %v1211 = vmax.f32 %v1083, 0.0
        %v1212 = vmax.f32 %v1084, 0.0
        %v1213 = vmax.f32 %v1085, 0.0
        %v1214 = vmax.f32 %v1086, 0.0
        %v1215 = vmax.f32 %v1087, 0.0
        %v1216 = vmax.f32 %v1088, 0.0
        %v1217 = vmax.f32 %v1089, 0.0
        %v1218 = vmax.f32 %v1090, 0.0
        %v1219 = vmax.f32 %v1091, 0.0
        %v1220 = vmax.f32 %v1092, 0.0
        %v1221 = vmax.f32 %v1093, 0.0
        %v1222 = vmax.f32 %v1094, 0.0
        %v1223 = vmax.f32 %v1095, 0.0
        %v1224 = vmax.f32 %v1096, 0.0
        %v1225 = vmax.f32 %v1097, 0.0
        %v1226 = vmax.f32 %v1098, 0.0
        %v1227 = vmax.f32 %v1099, 0.0
        %v1228 = vmax.f32 %v1100, 0.0
        %v1229 = vmax.f32 %v1101, 0.0
        %v1230 = vmax.f32 %v1102, 0.0
        %v1231 = vmax.f32 %v1103, 0.0
        %v1232 = vmax.f32 %v1104, 0.0
        %v1233 = vmax.f32 %v1105, 0.0
        %v1234 = vmax.f32 %v1106, 0.0
        %v1235 = vmax.f32 %v1107, 0.0
        %v1236 = vmax.f32 %v1108, 0.0
        %v1237 = vmax.f32 %v1109, 0.0
        %v1238 = vmax.f32 %v1110, 0.0
        %v1239 = vmax.f32 %v1111, 0.0
        %v1240 = vmax.f32 %v1112, 0.0
        %v1241 = vmax.f32 %v1113, 0.0
        %v1242 = vmax.f32 %v1114, 0.0
        %v1243 = vmax.f32 %v1115, 0.0
        %v1244 = vmax.f32 %v1116, 0.0
        %v1245 = vmax.f32 %v1117, 0.0
        %v1246 = vmax.f32 %v1118, 0.0
        %v1247 = vmax.f32 %v1119, 0.0
        %v1248 = vmax.f32 %v1120, 0.0
        %v1249 = vmax.f32 %v1121, 0.0
        %v1250 = vmax.f32 %v1122, 0.0
        %v1251 = vmax.f32 %v1123, 0.0
        %v1252 = vmax.f32 %v1124, 0.0
        %v1253 = vmax.f32 %v1125, 0.0
        %v1254 = vmax.f32 %v1126, 0.0
        %v1255 = vmax.f32 %v1127, 0.0
        %v1256 = vmax.f32 %v1128, 0.0
        %v1257 = vmax.f32 %v1129, 0.0
        %v1258 = vmax.f32 %v1130, 0.0
        %v1259 = vmax.f32 %v1131, 0.0
        %v1260 = vmax.f32 %v1132, 0.0
        %v1261 = vmax.f32 %v1133, 0.0
        %v1262 = vmax.f32 %v1134, 0.0
        %v1263 = vmax.f32 %v1135, 0.0
        %v1264 = vmax.f32 %v1136, 0.0
        %v1265 = vmax.f32 %v1137, 0.0
        %v1266 = vmax.f32 %v1138, 0.0
        %v1267 = vmax.f32 %v1139, 0.0
        %v1268 = vmax.f32 %v1140, 0.0
        %v1269 = vmax.f32 %v1141, 0.0
        %v1270 = vmax.f32 %v1142, 0.0
        %v1271 = vmax.f32 %v1143, 0.0
        %v1272 = vmax.f32 %v1144, 0.0
        %v1273 = vmax.f32 %v1145, 0.0
        %v1274 = vmax.f32 %v1146, 0.0
        %v1275 = vmax.f32 %v1147, 0.0
        %v1276 = vmax.f32 %v1148, 0.0
        %v1277 = vmax.f32 %v1149, 0.0
        %v1278 = vmax.f32 %v1150, 0.0
        %v1279 = vmax.f32 %v1151, 0.0
        %v1280 = vmax.f32 %v1152, 0.0
        %v1281 = vmax.f32 %v1153, 0.0
        %v1282 = vmax.f32 %v1154, 0.0
        %v1283 = vmax.f32 %v1155, 0.0
        %v1284 = vmax.f32 %v1156, 0.0
        %v1285 = vmax.f32 %v1157, 0.0
        %v1286 = vmax.f32 %v1158, 0.0
        %v1287 = vmax.f32 %v1159, 0.0
        %v1288 = vmax.f32 %v1160, 0.0
        %v1289 = vmax.f32 %v1161, 0.0
        %v1290 = vmax.f32 %v1162, 0.0
        %v1291 = vmax.f32 %v1163, 0.0
        %v1292 = vmax.f32 %v1164, 0.0
        %v1293 = vmax.f32 %v1165, 0.0
        %v1294 = vmax.f32 %v1166, 0.0
        %v1295 = vmax.f32 %v1167, 0.0
        %v1296 = vmax.f32 %v1168, 0.0
        %v1297 = vmax.f32 %v1169, 0.0
        %v1298 = vmax.f32 %v1170, 0.0
        %v1299 = vadd.f32 %v658, %v1171
        %v1300 = vadd.f32 %v659, %v1172
        %v1301 = vadd.f32 %v660, %v1173
        %v1302 = vadd.f32 %v661, %v1174
        %v1303 = vadd.f32 %v662, %v1175
        %v1304 = vadd.f32 %v663, %v1176
        %v1305 = vadd.f32 %v664, %v1177
        %v1306 = vadd.f32 %v665, %v1178
        %v1307 = vadd.f32 %v666, %v1179
        %v1308 = vadd.f32 %v667, %v1180
        %v1309 = vadd.f32 %v668, %v1181
        %v1310 = vadd.f32 %v669, %v1182
        %v1311 = vadd.f32 %v670, %v1183
        %v1312 = vadd.f32 %v671, %v1184
        %v1313 = vadd.f32 %v672, %v1185
        %v1314 = vadd.f32 %v673, %v1186
        %v1315 = vadd.f32 %v674, %v1187
        %v1316 = vadd.f32 %v675, %v1188
        %v1317 = vadd.f32 %v676, %v1189
        %v1318 = vadd.f32 %v677, %v1190
        %v1319 = vadd.f32 %v678, %v1191
        %v1320 = vadd.f32 %v679, %v1192
        %v1321 = vadd.f32 %v680, %v1193
        %v1322 = vadd.f32 %v681, %v1194
        %v1323 = vadd.f32 %v682, %v1195
        %v1324 = vadd.f32 %v683, %v1196
        %v1325 = vadd.f32 %v684, %v1197
        %v1326 = vadd.f32 %v685, %v1198
        %v1327 = vadd.f32 %v686, %v1199
        %v1328 = vadd.f32 %v687, %v1200
        %v1329 = vadd.f32 %v688, %v1201
        %v1330 = vadd.f32 %v689, %v1202
        %v1331 = vadd.f32 %v690, %v1203
        %v1332 = vadd.f32 %v691, %v1204
        %v1333 = vadd.f32 %v692, %v1205
        %v1334 = vadd.f32 %v693, %v1206
        %v1335 = vadd.f32 %v694, %v1207
        %v1336 = vadd.f32 %v695, %v1208
        %v1337 = vadd.f32 %v696, %v1209
        %v1338 = vadd.f32 %v697, %v1210
        %v1339 = vadd.f32 %v698, %v1211
        %v1340 = vadd.f32 %v699, %v1212
        %v1341 = vadd.f32 %v700, %v1213
        %v1342 = vadd.f32 %v701, %v1214
        %v1343 = vadd.f32 %v702, %v1215
        %v1344 = vadd.f32 %v703, %v1216
        %v1345 = vadd.f32 %v704, %v1217
        %v1346 = vadd.f32 %v705, %v1218
        %v1347 = vadd.f32 %v706, %v1219
        %v1348 = vadd.f32 %v707, %v1220
        %v1349 = vadd.f32 %v708, %v1221
        %v1350 = vadd.f32 %v709, %v1222
        %v1351 = vadd.f32 %v710, %v1223
        %v1352 = vadd.f32 %v711, %v1224
        %v1353 = vadd.f32 %v712, %v1225
        %v1354 = vadd.f32 %v713, %v1226
        %v1355 = vadd.f32 %v714, %v1227
        %v1356 = vadd.f32 %v715, %v1228
        %v1357 = vadd.f32 %v716, %v1229
        %v1358 = vadd.f32 %v717, %v1230
        %v1359 = vadd.f32 %v718, %v1231
        %v1360 = vadd.f32 %v719, %v1232
        %v1361 = vadd.f32 %v720, %v1233
        %v1362 = vadd.f32 %v721, %v1234
        %v1363 = vadd.f32 %v722, %v1235
        %v1364 = vadd.f32 %v723, %v1236
        %v1365 = vadd.f32 %v724, %v1237
        %v1366 = vadd.f32 %v725, %v1238
        %v1367 = vadd.f32 %v726, %v1239
        %v1368 = vadd.f32 %v727, %v1240
        %v1369 = vadd.f32 %v728, %v1241
        %v1370 = vadd.f32 %v729, %v1242
        %v1371 = vadd.f32 %v730, %v1243
        %v1372 = vadd.f32 %v731, %v1244
        %v1373 = vadd.f32 %v732, %v1245
        %v1374 = vadd.f32 %v733, %v1246
        %v1375 = vadd.f32 %v734, %v1247
        %v1376 = vadd.f32 %v735, %v1248
        %v1377 = vadd.f32 %v736, %v1249
        %v1378 = vadd.f32 %v737, %v1250
        %v1379 = vadd.f32 %v738, %v1251
        %v1380 = vadd.f32 %v739, %v1252
        %v1381 = vadd.f32 %v740, %v1253
        %v1382 = vadd.f32 %v741, %v1254
        %v1383 = vadd.f32 %v742, %v1255
        %v1384 = vadd.f32 %v743, %v1256
        %v1385 = vadd.f32 %v744, %v1257
        %v1386 = vadd.f32 %v745, %v1258
        %v1387 = vadd.f32 %v746, %v1259
        %v1388 = vadd.f32 %v747, %v1260
        %v1389 = vadd.f32 %v748, %v1261
        %v1390 = vadd.f32 %v749, %v1262
        %v1391 = vadd.f32 %v750, %v1263
        %v1392 = vadd.f32 %v751, %v1264
        %v1393 = vadd.f32 %v752, %v1265
        %v1394 = vadd.f32 %v753, %v1266
        %v1395 = vadd.f32 %v754, %v1267
        %v1396 = vadd.f32 %v755, %v1268
        %v1397 = vadd.f32 %v756, %v1269
        %v1398 = vadd.f32 %v757, %v1270
        %v1399 = vadd.f32 %v758, %v1271
        %v1400 = vadd.f32 %v759, %v1272
        %v1401 = vadd.f32 %v760, %v1273
        %v1402 = vadd.f32 %v761, %v1274
        %v1403 = vadd.f32 %v762, %v1275
        %v1404 = vadd.f32 %v763, %v1276
        %v1405 = vadd.f32 %v764, %v1277
        %v1406 = vadd.f32 %v765, %v1278
        %v1407 = vadd.f32 %v766, %v1279
        %v1408 = vadd.f32 %v767, %v1280
        %v1409 = vadd.f32 %v768, %v1281
        %v1410 = vadd.f32 %v769, %v1282
        %v1411 = vadd.f32 %v770, %v1283
        %v1412 = vadd.f32 %v771, %v1284
        %v1413 = vadd.f32 %v772, %v1285
        %v1414 = vadd.f32 %v773, %v1286
        %v1415 = vadd.f32 %v774, %v1287
        %v1416 = vadd.f32 %v775, %v1288
        %v1417 = vadd.f32 %v776, %v1289
        %v1418 = vadd.f32 %v777, %v1290
        %v1419 = vadd.f32 %v778, %v1291
        %v1420 = vadd.f32 %v779, %v1292
        %v1421 = vadd.f32 %v780, %v1293
        %v1422 = vadd.f32 %v781, %v1294
        %v1423 = vadd.f32 %v782, %v1295
        %v1424 = vadd.f32 %v783, %v1296
        %v1425 = vadd.f32 %v784, %v1297
        %v1426 = vadd.f32 %v785, %v1298
        %v1427 = vadd.f32 %v1299, %v1301
        %v1428 = vadd.f32 %v1300, %v1302
        %v1429 = vadd.f32 %v1303, %v1305
        %v1430 = vadd.f32 %v1304, %v1306
        %v1431 = vadd.f32 %v1307, %v1309
        %v1432 = vadd.f32 %v1308, %v1310
        %v1433 = vadd.f32 %v1311, %v1313
        %v1434 = vadd.f32 %v1312, %v1314
        %v1435 = vadd.f32 %v1315, %v1317
        %v1436 = vadd.f32 %v1316, %v1318
        %v1437 = vadd.f32 %v1319, %v1321
        %v1438 = vadd.f32 %v1320, %v1322
        %v1439 = vadd.f32 %v1323, %v1325
        %v1440 = vadd.f32 %v1324, %v1326
        %v1441 = vadd.f32 %v1327, %v1329
        %v1442 = vadd.f32 %v1328, %v1330
        %v1443 = vadd.f32 %v1331, %v1333
        %v1444 = vadd.f32 %v1332, %v1334
        %v1445 = vadd.f32 %v1335, %v1337
        %v1446 = vadd.f32 %v1336, %v1338
        %v1447 = vadd.f32 %v1339, %v1341
        %v1448 = vadd.f32 %v1340, %v1342
        %v1449 = vadd.f32 %v1343, %v1345
        %v1450 = vadd.f32 %v1344, %v1346
        %v1451 = vadd.f32 %v1347, %v1349
        %v1452 = vadd.f32 %v1348, %v1350
        %v1453 = vadd.f32 %v1351, %v1353
        %v1454 = vadd.f32 %v1352, %v1354
        %v1455 = vadd.f32 %v1355, %v1357
        %v1456 = vadd.f32 %v1356, %v1358
        %v1457 = vadd.f32 %v1359, %v1361
        %v1458 = vadd.f32 %v1360, %v1362
        %v1459 = vadd.f32 %v1363, %v1365
        %v1460 = vadd.f32 %v1364, %v1366
        %v1461 = vadd.f32 %v1367, %v1369
        %v1462 = vadd.f32 %v1368, %v1370
        %v1463 = vadd.f32 %v1371, %v1373
        %v1464 = vadd.f32 %v1372, %v1374
        %v1465 = vadd.f32 %v1375, %v1377
        %v1466 = vadd.f32 %v1376, %v1378
        %v1467 = vadd.f32 %v1379, %v1381
        %v1468 = vadd.f32 %v1380, %v1382
        %v1469 = vadd.f32 %v1383, %v1385
        %v1470 = vadd.f32 %v1384, %v1386
        %v1471 = vadd.f32 %v1387, %v1389
        %v1472 = vadd.f32 %v1388, %v1390
        %v1473 = vadd.f32 %v1391, %v1393
        %v1474 = vadd.f32 %v1392, %v1394
        %v1475 = vadd.f32 %v1395, %v1397
        %v1476 = vadd.f32 %v1396, %v1398
        %v1477 = vadd.f32 %v1399, %v1401
        %v1478 = vadd.f32 %v1400, %v1402
        %v1479 = vadd.f32 %v1403, %v1405
        %v1480 = vadd.f32 %v1404, %v1406
        %v1481 = vadd.f32 %v1407, %v1409
        %v1482 = vadd.f32 %v1408, %v1410
        %v1483 = vadd.f32 %v1411, %v1413
        %v1484 = vadd.f32 %v1412, %v1414
        %v1485 = vadd.f32 %v1415, %v1417
        %v1486 = vadd.f32 %v1416, %v1418
        %v1487 = vadd.f32 %v1419, %v1421
        %v1488 = vadd.f32 %v1420, %v1422
        %v1489 = vadd.f32 %v1423, %v1425
        %v1490 = vadd.f32 %v1424, %v1426
        %v1491 = vmul.f32 %v1427, 0.25
        %v1492 = vmul.f32 %v1428, 0.25
        %v1493 = vmul.f32 %v1429, 0.25
        %v1494 = vmul.f32 %v1430, 0.25
        %v1495 = vmul.f32 %v1431, 0.25
        %v1496 = vmul.f32 %v1432, 0.25
        %v1497 = vmul.f32 %v1433, 0.25
        %v1498 = vmul.f32 %v1434, 0.25
        %v1499 = vmul.f32 %v1435, 0.25
        %v1500 = vmul.f32 %v1436, 0.25
        %v1501 = vmul.f32 %v1437, 0.25
        %v1502 = vmul.f32 %v1438, 0.25
        %v1503 = vmul.f32 %v1439, 0.25
        %v1504 = vmul.f32 %v1440, 0.25
        %v1505 = vmul.f32 %v1441, 0.25
        %v1506 = vmul.f32 %v1442, 0.25
        %v1507 = vmul.f32 %v1443, 0.25
        %v1508 = vmul.f32 %v1444, 0.25
        %v1509 = vmul.f32 %v1445, 0.25
        %v1510 = vmul.f32 %v1446, 0.25
        %v1511 = vmul.f32 %v1447, 0.25
        %v1512 = vmul.f32 %v1448, 0.25
        %v1513 = vmul.f32 %v1449, 0.25
        %v1514 = vmul.f32 %v1450, 0.25
        %v1515 = vmul.f32 %v1451, 0.25
        %v1516 = vmul.f32 %v1452, 0.25
        %v1517 = vmul.f32 %v1453, 0.25
        %v1518 = vmul.f32 %v1454, 0.25
        %v1519 = vmul.f32 %v1455, 0.25
        %v1520 = vmul.f32 %v1456, 0.25
        %v1521 = vmul.f32 %v1457, 0.25
        %v1522 = vmul.f32 %v1458, 0.25
        %v1523 = vmul.f32 %v1459, 0.25
        %v1524 = vmul.f32 %v1460, 0.25
        %v1525 = vmul.f32 %v1461, 0.25
        %v1526 = vmul.f32 %v1462, 0.25
        %v1527 = vmul.f32 %v1463, 0.25
        %v1528 = vmul.f32 %v1464, 0.25
        %v1529 = vmul.f32 %v1465, 0.25
        %v1530 = vmul.f32 %v1466, 0.25
        %v1531 = vmul.f32 %v1467, 0.25
        %v1532 = vmul.f32 %v1468, 0.25
        %v1533 = vmul.f32 %v1469, 0.25
        %v1534 = vmul.f32 %v1470, 0.25
        %v1535 = vmul.f32 %v1471, 0.25
        %v1536 = vmul.f32 %v1472, 0.25
        %v1537 = vmul.f32 %v1473, 0.25
        %v1538 = vmul.f32 %v1474, 0.25
        %v1539 = vmul.f32 %v1475, 0.25
        %v1540 = vmul.f32 %v1476, 0.25
        %v1541 = vmul.f32 %v1477, 0.25
        %v1542 = vmul.f32 %v1478, 0.25
        %v1543 = vmul.f32 %v1479, 0.25
        %v1544 = vmul.f32 %v1480, 0.25
        %v1545 = vmul.f32 %v1481, 0.25
        %v1546 = vmul.f32 %v1482, 0.25
        %v1547 = vmul.f32 %v1483, 0.25
        %v1548 = vmul.f32 %v1484, 0.25
        %v1549 = vmul.f32 %v1485, 0.25
        %v1550 = vmul.f32 %v1486, 0.25
        %v1551 = vmul.f32 %v1487, 0.25
        %v1552 = vmul.f32 %v1488, 0.25
        %v1553 = vmul.f32 %v1489, 0.25
        %v1554 = vmul.f32 %v1490, 0.25
        %v1555 = vld [vmem:[%s3] sm:$0xff]
        %v1556 = vld [vmem:[%s3 + $0x8] sm:$0xff]
        %v1557 = vld [vmem:[%s3 + $0x10] sm:$0xff]
        %v1558 = vld [vmem:[%s3 + $0x18] sm:$0xff]
        %v1559 = vld [vmem:[%s3 + $0x20] sm:$0xff]
        %v1560 = vld [vmem:[%s3 + $0x28] sm:$0xff]
        %v1561 = vld [vmem:[%s3 + $0x30] sm:$0xff]
        %v1562 = vld [vmem:[%s3 + $0x38] sm:$0xff]
        %v1563 = vld [vmem:[%s3 + $0x40] sm:$0xff]
        %v1564 = vld [vmem:[%s3 + $0x48] sm:$0xff]
        %v1565 = vld [vmem:[%s3 + $0x50] sm:$0xff]
        %v1566 = vld [vmem:[%s3 + $0x58] sm:$0xff]
        %v1567 = vld [vmem:[%s3 + $0x60] sm:$0xff]
        %v1568 = vld [vmem:[%s3 + $0x68] sm:$0xff]
        %v1569 = vld [vmem:[%s3 + $0x70] sm:$0xff]
        %v1570 = vld [vmem:[%s3 + $0x78] sm:$0xff]
        %v1571 = vld [vmem:[%s3 + $0x80] sm:$0xff]
        %v1572 = vld [vmem:[%s3 + $0x88] sm:$0xff]
        %v1573 = vld [vmem:[%s3 + $0x90] sm:$0xff]
        %v1574 = vld [vmem:[%s3 + $0x98] sm:$0xff]
        %v1575 = vld [vmem:[%s3 + $0xa0] sm:$0xff]
        %v1576 = vld [vmem:[%s3 + $0xa8] sm:$0xff]
        %v1577 = vld [vmem:[%s3 + $0xb0] sm:$0xff]
        %v1578 = vld [vmem:[%s3 + $0xb8] sm:$0xff]
        %v1579 = vld [vmem:[%s3 + $0xc0] sm:$0xff]
        %v1580 = vld [vmem:[%s3 + $0xc8] sm:$0xff]
        %v1581 = vld [vmem:[%s3 + $0xd0] sm:$0xff]
        %v1582 = vld [vmem:[%s3 + $0xd8] sm:$0xff]
        %v1583 = vld [vmem:[%s3 + $0xe0] sm:$0xff]
        %v1584 = vld [vmem:[%s3 + $0xe8] sm:$0xff]
        %v1585 = vld [vmem:[%s3 + $0xf0] sm:$0xff]
        %v1586 = vld [vmem:[%s3 + $0xf8] sm:$0xff]
        %1587 = vmatprep.subr.mxu0 0.0
        %1588 = vmatpush1.msra.mxu0 %v1555
        %1589 = vmatprep.subr.mxu0 0.0
        %1590 = vmatpush1.msra.mxu0 %v1556
        %1591 = vmatprep.subr.mxu0 0.0
        %1592 = vmatpush1.msra.mxu0 %v1557
        %1593 = vmatprep.subr.mxu0 0.0
        %1594 = vmatpush1.msra.mxu0 %v1558
        %1595 = vmatprep.subr.mxu0 0.0
        %1596 = vmatpush1.msra.mxu0 %v1559
        %1597 = vmatprep.subr.mxu0 0.0
        %1598 = vmatpush1.msra.mxu0 %v1560
        %1599 = vmatprep.subr.mxu0 0.0
        %1600 = vmatpush1.msra.mxu0 %v1561
        %1601 = vmatprep.subr.mxu0 0.0
        %1602 = vmatpush1.msra.mxu0 %v1562
        %1603 = vmatprep.subr.mxu0 0.0
        %1604 = vmatpush1.msra.mxu0 %v1563
        %1605 = vmatprep.subr.mxu0 0.0
        %1606 = vmatpush1.msra.mxu0 %v1564
        %1607 = vmatprep.subr.mxu0 0.0
        %1608 = vmatpush1.msra.mxu0 %v1565
        %1609 = vmatprep.subr.mxu0 0.0
        %1610 = vmatpush1.msra.mxu0 %v1566
        %1611 = vmatprep.subr.mxu0 0.0
        %1612 = vmatpush1.msra.mxu0 %v1567
        %1613 = vmatprep.subr.mxu0 0.0
        %1614 = vmatpush1.msra.mxu0 %v1568
        %1615 = vmatprep.subr.mxu0 0.0
        %1616 = vmatpush1.msra.mxu0 %v1569
        %1617 = vmatprep.subr.mxu0 0.0
        %1618 = vmatpush1.msra.mxu0 %v1570
        %1619 = vmatprep.subr.mxu0 0.0
        %1620 = vmatpush1.msra.mxu0 %v1571
        %1621 = vmatprep.subr.mxu0 0.0
        %1622 = vmatpush1.msra.mxu0 %v1572
        %1623 = vmatprep.subr.mxu0 0.0
        %1624 = vmatpush1.msra.mxu0 %v1573
        %1625 = vmatprep.subr.mxu0 0.0
        %1626 = vmatpush1.msra.mxu0 %v1574
        %1627 = vmatprep.subr.mxu0 0.0
        %1628 = vmatpush1.msra.mxu0 %v1575
        %1629 = vmatprep.subr.mxu0 0.0
        %1630 = vmatpush1.msra.mxu0 %v1576
        %1631 = vmatprep.subr.mxu0 0.0
        %1632 = vmatpush1.msra.mxu0 %v1577
        %1633 = vmatprep.subr.mxu0 0.0
        %1634 = vmatpush1.msra.mxu0 %v1578
        %1635 = vmatprep.subr.mxu0 0.0
        %1636 = vmatpush1.msra.mxu0 %v1579
        %1637 = vmatprep.subr.mxu0 0.0
        %1638 = vmatpush1.msra.mxu0 %v1580
        %1639 = vmatprep.subr.mxu0 0.0
        %1640 = vmatpush1.msra.mxu0 %v1581
        %1641 = vmatprep.subr.mxu0 0.0
        %1642 = vmatpush1.msra.mxu0 %v1582
        %1643 = vmatprep.subr.mxu0 0.0
        %1644 = vmatpush1.msra.mxu0 %v1583
        %1645 = vmatprep.subr.mxu0 0.0
        %1646 = vmatpush1.msra.mxu0 %v1584
        %1647 = vmatprep.subr.mxu0 0.0
        %1648 = vmatpush1.msra.mxu0 %v1585
        %1649 = vmatprep.subr.mxu0 0.0
        %1650 = vmatpush1.msra.mxu0 %v1586
        %1651 = vmatprep.mubr.f32.mxu0 %v1492
        %1652 = vmatmul.mubr.f32.gmra.mrb[0].mxu0 %v1491
        %v1653 = vpop.f32.mrb[0].mxu0
        %v1654 = vadd.f32 0.0, %v1653
        %v1655 = vpop.f32.mrb[0].mxu0
        %1656 = vmatprep.mubr.f32.mxu0 %v1494
        %1657 = vmatmul.mubr.f32.gmra.mrb[0].mxu0 %v1493
        %v1658 = vpop.f32.mrb[0].mxu0
        %v1659 = vadd.f32 0.0, %v1658
        %v1660 = vpop.f32.mrb[0].mxu0
        %1661 = vmatprep.mubr.f32.mxu0 %v1496
        %1662 = vmatmul.mubr.f32.gmra.mrb[0].mxu0 %v1495
        %v1663 = vpop.f32.mrb[0].mxu0
        %v1664 = vadd.f32 0.0, %v1663
        %v1665 = vpop.f32.mrb[0].mxu0
        %1666 = vmatprep.mubr.f32.mxu0 %v1498
        %1667 = vmatmul.mubr.f32.gmra.mrb[0].mxu0 %v1497
        %v1668 = vpop.f32.mrb[0].mxu0
        %v1669 = vadd.f32 0.0, %v1668
        %v1670 = vpop.f32.mrb[0].mxu0
        %1671 = vmatprep.mubr.f32.mxu0 %v1500
        %1672 = vmatmul.mubr.f32.gmra.mrb[0].mxu0 %v1499
        %v1673 = vpop.f32.mrb[0].mxu0
        %v1674 = vadd.f32 0.0, %v1673
        %v1675 = vpop.f32.mrb[0].mxu0
        %1676 = vmatprep.mubr.f32.mxu0 %v1502
        %1677 = vmatmul.mubr.f32.gmra.mrb[0].mxu0 %v1501
        %v1678 = vpop.f32.mrb[0].mxu0
        %v1679 = vadd.f32 0.0, %v1678
        %v1680 = vpop.f32.mrb[0].mxu0
        %1681 = vmatprep.mubr.f32.mxu0 %v1504
        %1682 = vmatmul.mubr.f32.gmra.mrb[0].mxu0 %v1503
        %v1683 = vpop.f32.mrb[0].mxu0
        %v1684 = vadd.f32 0.0, %v1683
        %v1685 = vpop.f32.mrb[0].mxu0
        %1686 = vmatprep.mubr.f32.mxu0 %v1506
        %1687 = vmatmul.mubr.f32.gmra.mrb[0].mxu0 %v1505
        %v1688 = vpop.f32.mrb[0].mxu0
        %v1689 = vadd.f32 0.0, %v1688
        %v1690 = vpop.f32.mrb[0].mxu0
        %1691 = vmatprep.mubr.f32.mxu0 %v1508
        %1692 = vmatmul.mubr.f32.gmra.mrb[0].mxu0 %v1507
        %v1693 = vpop.f32.mrb[0].mxu0
        %v1694 = vadd.f32 0.0, %v1693
        %v1695 = vpop.f32.mrb[0].mxu0
        %1696 = vmatprep.mubr.f32.mxu0 %v1510
        %1697 = vmatmul.mubr.f32.gmra.mrb[0].mxu0 %v1509
        %v1698 = vpop.f32.mrb[0].mxu0
        %v1699 = vadd.f32 0.0, %v1698
        %v1700 = vpop.f32.mrb[0].mxu0
        %1701 = vmatprep.mubr.f32.mxu0 %v1512
        %1702 = vmatmul.mubr.f32.gmra.mrb[0].mxu0 %v1511
        %v1703 = vpop.f32.mrb[0].mxu0
        %v1704 = vadd.f32 0.0, %v1703
        %v1705 = vpop.f32.mrb[0].mxu0
        %1706 = vmatprep.mubr.f32.mxu0 %v1514
        %1707 = vmatmul.mubr.f32.gmra.mrb[0].mxu0 %v1513
        %v1708 = vpop.f32.mrb[0].mxu0
        %v1709 = vadd.f32 0.0, %v1708
        %v1710 = vpop.f32.mrb[0].mxu0
        %1711 = vmatprep.mubr.f32.mxu0 %v1516
        %1712 = vmatmul.mubr.f32.gmra.mrb[0].mxu0 %v1515
        %v1713 = vpop.f32.mrb[0].mxu0
        %v1714 = vadd.f32 0.0, %v1713
        %v1715 = vpop.f32.mrb[0].mxu0
        %1716 = vmatprep.mubr.f32.mxu0 %v1518
        %1717 = vmatmul.mubr.f32.gmra.mrb[0].mxu0 %v1517
        %v1718 = vpop.f32.mrb[0].mxu0
        %v1719 = vadd.f32 0.0, %v1718
        %v1720 = vpop.f32.mrb[0].mxu0
        %1721 = vmatprep.mubr.f32.mxu0 %v1520
        %1722 = vmatmul.mubr.f32.gmra.mrb[0].mxu0 %v1519
        %v1723 = vpop.f32.mrb[0].mxu0
        %v1724 = vadd.f32 0.0, %v1723
        %v1725 = vpop.f32.mrb[0].mxu0
        %1726 = vmatprep.mubr.f32.mxu0 %v1522
        %1727 = vmatmul.mubr.f32.gmra.mrb[0].mxu0 %v1521
        %v1728 = vpop.f32.mrb[0].mxu0
        %v1729 = vadd.f32 0.0, %v1728
        %v1730 = vpop.f32.mrb[0].mxu0
        %1731 = vmatprep.mubr.f32.mxu0 %v1524
        %1732 = vmatmul.mubr.f32.gmra.mrb[0].mxu0 %v1523
        %v1733 = vpop.f32.mrb[0].mxu0
        %v1734 = vadd.f32 0.0, %v1733
        %v1735 = vpop.f32.mrb[0].mxu0
        %1736 = vmatprep.mubr.f32.mxu0 %v1526
        %1737 = vmatmul.mubr.f32.gmra.mrb[0].mxu0 %v1525
        %v1738 = vpop.f32.mrb[0].mxu0
        %v1739 = vadd.f32 0.0, %v1738
        %v1740 = vpop.f32.mrb[0].mxu0
        %1741 = vmatprep.mubr.f32.mxu0 %v1528
        %1742 = vmatmul.mubr.f32.gmra.mrb[0].mxu0 %v1527
        %v1743 = vpop.f32.mrb[0].mxu0
        %v1744 = vadd.f32 0.0, %v1743
        %v1745 = vpop.f32.mrb[0].mxu0
        %1746 = vmatprep.mubr.f32.mxu0 %v1530
        %1747 = vmatmul.mubr.f32.gmra.mrb[0].mxu0 %v1529
        %v1748 = vpop.f32.mrb[0].mxu0
        %v1749 = vadd.f32 0.0, %v1748
        %v1750 = vpop.f32.mrb[0].mxu0
        %1751 = vmatprep.mubr.f32.mxu0 %v1532
        %1752 = vmatmul.mubr.f32.gmra.mrb[0].mxu0 %v1531
        %v1753 = vpop.f32.mrb[0].mxu0
        %v1754 = vadd.f32 0.0, %v1753
        %v1755 = vpop.f32.mrb[0].mxu0
        %1756 = vmatprep.mubr.f32.mxu0 %v1534
        %1757 = vmatmul.mubr.f32.gmra.mrb[0].mxu0 %v1533
        %v1758 = vpop.f32.mrb[0].mxu0
        %v1759 = vadd.f32 0.0, %v1758
        %v1760 = vpop.f32.mrb[0].mxu0
        %1761 = vmatprep.mubr.f32.mxu0 %v1536
        %1762 = vmatmul.mubr.f32.gmra.mrb[0].mxu0 %v1535
        %v1763 = vpop.f32.mrb[0].mxu0
        %v1764 = vadd.f32 0.0, %v1763
        %v1765 = vpop.f32.mrb[0].mxu0
        %1766 = vmatprep.mubr.f32.mxu0 %v1538
        %1767 = vmatmul.mubr.f32.gmra.mrb[0].mxu0 %v1537
        %v1768 = vpop.f32.mrb[0].mxu0
        %v1769 = vadd.f32 0.0, %v1768
        %v1770 = vpop.f32.mrb[0].mxu0
        %1771 = vmatprep.mubr.f32.mxu0 %v1540
        %1772 = vmatmul.mubr.f32.gmra.mrb[0].mxu0 %v1539
        %v1773 = vpop.f32.mrb[0].mxu0
        %v1774 = vadd.f32 0.0, %v1773
        %v1775 = vpop.f32.mrb[0].mxu0
        %1776 = vmatprep.mubr.f32.mxu0 %v1542
        %1777 = vmatmul.mubr.f32.gmra.mrb[0].mxu0 %v1541
        %v1778 = vpop.f32.mrb[0].mxu0
        %v1779 = vadd.f32 0.0, %v1778
        %v1780 = vpop.f32.mrb[0].mxu0
        %1781 = vmatprep.mubr.f32.mxu0 %v1544
        %1782 = vmatmul.mubr.f32.gmra.mrb[0].mxu0 %v1543
        %v1783 = vpop.f32.mrb[0].mxu0
        %v1784 = vadd.f32 0.0, %v1783
        %v1785 = vpop.f32.mrb[0].mxu0
        %1786 = vmatprep.mubr.f32.mxu0 %v1546
        %1787 = vmatmul.mubr.f32.gmra.mrb[0].mxu0 %v1545
        %v1788 = vpop.f32.mrb[0].mxu0
        %v1789 = vadd.f32 0.0, %v1788
        %v1790 = vpop.f32.mrb[0].mxu0
        %1791 = vmatprep.mubr.f32.mxu0 %v1548
        %1792 = vmatmul.mubr.f32.gmra.mrb[0].mxu0 %v1547
        %v1793 = vpop.f32.mrb[0].mxu0
        %v1794 = vadd.f32 0.0, %v1793
        %v1795 = vpop.f32.mrb[0].mxu0
        %1796 = vmatprep.mubr.f32.mxu0 %v1550
        %1797 = vmatmul.mubr.f32.gmra.mrb[0].mxu0 %v1549
        %v1798 = vpop.f32.mrb[0].mxu0
        %v1799 = vadd.f32 0.0, %v1798
        %v1800 = vpop.f32.mrb[0].mxu0
        %1801 = vmatprep.mubr.f32.mxu0 %v1552
        %1802 = vmatmul.mubr.f32.gmra.mrb[0].mxu0 %v1551
        %v1803 = vpop.f32.mrb[0].mxu0
        %v1804 = vadd.f32 0.0, %v1803
        %v1805 = vpop.f32.mrb[0].mxu0
        %1806 = vmatprep.mubr.f32.mxu0 %v1554
        %1807 = vmatmul.mubr.f32.gmra.mrb[0].mxu0 %v1553
        %v1808 = vpop.f32.mrb[0].mxu0
        %v1809 = vadd.f32 0.0, %v1808
        %v1810 = vpop.f32.mrb[0].mxu0
        %1811 = vdwg.mxu0
        %1812 = vst [vmem:[%s217] sm:$0xff] %v1654
        %1813 = vst [vmem:[%s217 + $0x8] sm:$0xff] %v1659
        %1814 = vst [vmem:[%s217 + $0x10] sm:$0xff] %v1664
        %1815 = vst [vmem:[%s217 + $0x18] sm:$0xff] %v1669
        %1816 = vst [vmem:[%s217 + $0x20] sm:$0xff] %v1674
        %1817 = vst [vmem:[%s217 + $0x28] sm:$0xff] %v1679
        %1818 = vst [vmem:[%s217 + $0x30] sm:$0xff] %v1684
        %1819 = vst [vmem:[%s217 + $0x38] sm:$0xff] %v1689
        %1820 = vst [vmem:[%s217 + $0x40] sm:$0xff] %v1694
        %1821 = vst [vmem:[%s217 + $0x48] sm:$0xff] %v1699
        %1822 = vst [vmem:[%s217 + $0x50] sm:$0xff] %v1704
        %1823 = vst [vmem:[%s217 + $0x58] sm:$0xff] %v1709
        %1824 = vst [vmem:[%s217 + $0x60] sm:$0xff] %v1714
        %1825 = vst [vmem:[%s217 + $0x68] sm:$0xff] %v1719
        %1826 = vst [vmem:[%s217 + $0x70] sm:$0xff] %v1724
        %1827 = vst [vmem:[%s217 + $0x78] sm:$0xff] %v1729
        %1828 = vst [vmem:[%s217 + $0x80] sm:$0xff] %v1734
        %1829 = vst [vmem:[%s217 + $0x88] sm:$0xff] %v1739
        %1830 = vst [vmem:[%s217 + $0x90] sm:$0xff] %v1744
        %1831 = vst [vmem:[%s217 + $0x98] sm:$0xff] %v1749
        %1832 = vst [vmem:[%s217 + $0xa0] sm:$0xff] %v1754
        %1833 = vst [vmem:[%s217 + $0xa8] sm:$0xff] %v1759
        %1834 = vst [vmem:[%s217 + $0xb0] sm:$0xff] %v1764
        %1835 = vst [vmem:[%s217 + $0xb8] sm:$0xff] %v1769
        %1836 = vst [vmem:[%s217 + $0xc0] sm:$0xff] %v1774
        %1837 = vst [vmem:[%s217 + $0xc8] sm:$0xff] %v1779
        %1838 = vst [vmem:[%s217 + $0xd0] sm:$0xff] %v1784
        %1839 = vst [vmem:[%s217 + $0xd8] sm:$0xff] %v1789
        %1840 = vst [vmem:[%s217 + $0xe0] sm:$0xff] %v1794
        %1841 = vst [vmem:[%s217 + $0xe8] sm:$0xff] %v1799
        %1842 = vst [vmem:[%s217 + $0xf0] sm:$0xff] %v1804
        %1843 = vst [vmem:[%s217 + $0xf8] sm:$0xff] %v1809
        %s1844 = sand.u32 %s131, 1
        %s1845 = scalar_lea.sflag [#allocation3], %s1844
        %s1846 = sand.u32 %s131, 1
        %s1847 = smul.addr %s1846, 256
        %s1848 = scalar_lea.vmem [#allocation2], %s1847
        // Predicated region
        $region37: #{_lambda_.1} parent=35 // pred_check
          %p1849 = pneg %p141
        $region38: #{_lambda_.1} parent=35 // pred_check_branch
          %1851 = sbr.rel (%p1849) target = $region40
        $region39: #{_lambda_.1} parent=35 // pred_region
          %s1852 = smul.u32 16, %s23
          %s1854 = ssub.s32 4096, 4096
          %1855 = vsyncadd %s1845, %s1854
          %s1856 = smul.addr %s1852, 2
          %s1857 = smul.addr %s22, 32
          %s1858 = sadd.s32 %s1856, %s1857
          %s1859 = smul.addr %s1858, 128
          %s1860 = scalar_lea.hbm %s4, %s1859
          %s1861 = sshll.u32 %s1848, 4
          %s1862 = int_to_ptr.vmem [resolvable:$true] %s1861
          %1867 = dma.vmem_to_hbm [thread:$0]  %s1862, 4096, %s1860, %s1845, 128, 128, 8
        $region40: #{_lambda_.1} parent=35 // pred_fallthru
          _
      $region36: #{_lambda_.1} parent=5 // pred_fallthru
        _
      %p1868 = scmp.le.s32.totalorder 2, %s13
      // Predicated region
      $region41: #{_lambda_.1} parent=5 // pred_check
        %p1869 = pneg %p1868
      $region42: #{_lambda_.1} parent=5 // pred_check_branch
        %1871 = sbr.rel (%p1869) target = $region44
      $region43: #{_lambda_.1} parent=5 // pred_region
        %s1872 = ssub.s32 %s13, 2
        // Predicated region
        $region45: #{_lambda_.1} parent=43 // pred_check
          %p1873 = pneg %p147
        $region46: #{_lambda_.1} parent=43 // pred_check_branch
          %1875 = sbr.rel (%p1873) target = $region48
        $region47: #{_lambda_.1} parent=43 // pred_region
          %s1876 = sand.u32 %s132, 1
          %s1877 = scalar_lea.sflag [#allocation3], %s1876
          %s1878 = sand.u32 %s132, 1
          %s1879 = smul.addr %s1878, 256
          %s1880 = scalar_lea.vmem [#allocation2], %s1879
          %1881 = dma.done %s1877, 4096
        $region48: #{_lambda_.1} parent=43 // pred_fallthru
          _
      $region44: #{_lambda_.1} parent=5 // pred_fallthru
        _
    $region6: #{_lambda_.1} parent=1 // loop_footer
      %s17 = sadd.s32 1, %s13
    $region7: #{_lambda_.1} parent=1 // loop_footer_branch
      %12 = sbr.rel target = $region3
    $region8: #{_lambda_.1} parent=1 // loop_exit
      _
    %1882 = vsyncpa [#allocation3], 1
    %s1883 = scalar_lea.sflag [#allocation3], 1
    %1884 = vsyncpa %s1883, 1

</llo_original>
